<compile_context>
chip_gen: v7x
topology: tpu7x:2x2x1
jax: 0.10.0
libtpu: 0.0.40
codegen_flags: <defaults>
</compile_context>

<pallas_src>
import functools
import math

import jax
import jax.numpy as jnp
import numpy as np
from jax.experimental import pallas as pl
from jax.experimental.pallas import tpu as pltpu


def bayesian_lstm_kernel(
    x_ref,        # (T, B, D)   time-major input
    wih1_ref,     # (D, 4H)     layer-0 input weights (transposed)
    b1_ref,       # (1, 4H)     layer-0 bias (b_ih + b_hh)
    wh1_ref,      # (H, 8H)     fused [whh1 | wih2] (transposed)
    whh2_ref,     # (H, 4H)     layer-1 hidden weights (transposed)
    b2_ref,       # (1, 4H)     layer-1 bias (b_ih + b_hh)
    whead_ref,    # (H, 2O)     fused [W_mu | W_var] (transposed)
    bhead_ref,    # (1, 2O)     fused [b_mu | b_var]
    out_ref,      # (B, 2O)     [mu | softplus(var)+1e-6]
    *,
    hid,
    seq_len,
    out_dim,
):
    T = seq_len
    B = x_ref.shape[1]
    D = x_ref.shape[2]
    H = hid
    G = 4 * H

    # ---- Hoisted layer-0 input projection (one MXU call, all timesteps) ---
    # Stored time-major so g0_all[t] is a leading-axis block inside the loop.
    x_flat = x_ref[...].reshape(T * B, D)
    g0_all = (jnp.dot(x_flat, wih1_ref[...], preferred_element_type=jnp.float32)
              + b1_ref[...]).reshape(T, B, G)

    wh1 = wh1_ref[...]        # (H, 8H) = [whh1 | wih2]
    whh2 = whh2_ref[...]      # (H, 4H)
    b2 = b2_ref[...]

    def gate_nonlin(gates, c_prev):
        # PyTorch gate order: i, f, g, o. Activate the full (B, 4H) vreg once
        # per nonlinearity (2 EUP passes) and slice afterwards.
        sig = jax.nn.sigmoid(gates)
        tnh = jnp.tanh(gates)
        i = sig[:, 0 * H:1 * H]
        f = sig[:, 1 * H:2 * H]
        g = tnh[:, 2 * H:3 * H]
        o = sig[:, 3 * H:4 * H]
        c_new = f * c_prev + i * g
        h_new = o * jnp.tanh(c_new)
        return h_new, c_new

    zeros_bh = jnp.zeros((B, H), jnp.float32)
    h2, c1, c2 = zeros_bh, zeros_bh, zeros_bh
    hh1 = jnp.zeros((B, G), jnp.float32)   # carries h1[t-1] @ whh1

    # seq_len is small & static: full unroll, states live in vregs
    # (no per-step VMEM traffic; LLO sees the whole dependence chain).
    for t in range(T):
        # Layer 0: input projection precomputed; hidden part carried in hh1.
        g1 = g0_all[t] + hh1
        h1, c1 = gate_nonlin(g1, c1)

        # One 256-wide matmul serves both layer-0's next-step hidden
        # projection and layer-1's input projection; split at lane 128.
        p1 = jnp.dot(h1, wh1, preferred_element_type=jnp.float32)   # (B, 8H)
        hh1 = p1[:, :G]

        # Layer 1 (h2 @ whh2 is off the h1 critical chain; no lane concat).
        # Inter-layer dropout is inference-off (identity).
        g2 = p1[:, G:] + jnp.dot(h2, whh2,
                                 preferred_element_type=jnp.float32) + b2
        h2, c2 = gate_nonlin(g2, c2)

    # ---- Output heads: computed once, after the recurrence -----------------
    head = (jnp.dot(h2, whead_ref[...], preferred_element_type=jnp.float32)
            + bhead_ref[...])                            # (B, 2O) = [mu | var logits]
    sp = jnp.logaddexp(head, 0.0) + 1e-6                 # stable softplus + eps
    col = jax.lax.broadcasted_iota(jnp.int32, head.shape, 1)
    out_ref[...] = jnp.where(col < out_dim, head, sp)    # lane-select mu vs var
    # TODO(synk): if O/B ever scale, pad 2O up to a multiple of 128 for a
    #             lane-dense unmasked store and slice in the wrapper.


def fuse_params(p):
    """One-time weight fusion for the kernel (kept out of the per-call path)."""
    return dict(
        wih1=p["wih1"],                                         # (D, 4H)
        b1=p["b1"],                                             # (1, 4H)
        wh1=jnp.concatenate([p["whh1"], p["wih2"]], axis=1),    # (H, 8H)
        whh2=p["whh2"],                                         # (H, 4H)
        b2=p["b2"],                                             # (1, 4H)
        whead=jnp.concatenate([p["wmu"], p["wvar"]], axis=1),   # (H, 2O)
        bhead=jnp.concatenate([p["bmu"], p["bvar"]], axis=1),   # (1, 2O)
    )


@functools.partial(jax.jit, static_argnames=("hid",))
def bayesian_lstm_forward(x, fused, hid):
    """x: (B, T, D) float32 (PyTorch batch_first). Returns (mu, var)."""
    B, T, D = x.shape
    O = fused["whead"].shape[1] // 2

    x_tbd = jnp.transpose(x, (1, 0, 2))   # time-major; tiny, fuses into the jit

    kernel = functools.partial(bayesian_lstm_kernel,
                               hid=hid, seq_len=T, out_dim=O)
    vmem = pl.BlockSpec(memory_space=pltpu.MemorySpace.VMEM)

    out = pl.pallas_call(
        kernel,
        out_shape=jax.ShapeDtypeStruct((B, 2 * O), jnp.float32),
        in_specs=[vmem] * 8,
        out_specs=vmem,
    )(x_tbd, fused["wih1"], fused["b1"], fused["wh1"], fused["whh2"],
      fused["b2"], fused["whead"], fused["bhead"])

    return out[:, :O], out[:, O:]   # split fuses under jit


def init_params(key, in_dim, hid, out_dim):
    """Deterministic synthetic init (LSTM: U(-1/sqrt(H),1/sqrt(H)); heads: xavier, zero bias)."""
    ks = jax.random.split(key, 10)
    stdv = 1.0 / math.sqrt(hid)
    u = lambda k, shape: jax.random.uniform(k, shape, jnp.float32, -stdv, stdv)

    # Stored pre-transposed for (x @ W) matmuls.
    wih1 = u(ks[0], (in_dim, 4 * hid))
    whh1 = u(ks[1], (hid, 4 * hid))
    b1 = u(ks[2], (1, 4 * hid)) + u(ks[3], (1, 4 * hid))  # b_ih + b_hh
    wih2 = u(ks[4], (hid, 4 * hid))
    whh2 = u(ks[5], (hid, 4 * hid))
    b2 = u(ks[6], (1, 4 * hid)) + u(ks[7], (1, 4 * hid))

    lim = math.sqrt(6.0 / (hid + out_dim))  # xavier_uniform
    wmu = jax.random.uniform(ks[8], (hid, out_dim), jnp.float32, -lim, lim)
    wvar = jax.random.uniform(ks[9], (hid, out_dim), jnp.float32, -lim, lim)
    bmu = jnp.zeros((1, out_dim), jnp.float32)
    bvar = jnp.zeros((1, out_dim), jnp.float32)

    return dict(wih1=wih1, whh1=whh1, b1=b1, wih2=wih2, whh2=whh2, b2=b2,
                wmu=wmu, bmu=bmu, wvar=wvar, bvar=bvar)


def reference_forward(x, p, hid):
    """Pure-JAX reference for correctness checking (unfused weights)."""
    B, T, D = x.shape
    h1 = jnp.zeros((B, hid), jnp.float32)
    c1 = jnp.zeros((B, hid), jnp.float32)
    h2 = jnp.zeros((B, hid), jnp.float32)
    c2 = jnp.zeros((B, hid), jnp.float32)

    def cell(x_t, h, c, wih, whh, b):
        g = x_t @ wih + h @ whh + b
        i = jax.nn.sigmoid(g[:, 0 * hid:1 * hid])
        f = jax.nn.sigmoid(g[:, 1 * hid:2 * hid])
        gg = jnp.tanh(g[:, 2 * hid:3 * hid])
        o = jax.nn.sigmoid(g[:, 3 * hid:4 * hid])
        c = f * c + i * gg
        h = o * jnp.tanh(c)
        return h, c

    for t in range(T):
        h1, c1 = cell(x[:, t, :], h1, c1, p["wih1"], p["whh1"], p["b1"])
        h2, c2 = cell(h1, h2, c2, p["wih2"], p["whh2"], p["b2"])

    mu = h2 @ p["wmu"] + p["bmu"]
    var = jax.nn.softplus(h2 @ p["wvar"] + p["bvar"]) + 1e-6
    return mu, var


if __name__ == "__main__":
    B, T, IN_DIM, HID, OUT_DIM = 2, 8, 4, 32, 1

    key = jax.random.PRNGKey(0)
    k_x, k_p = jax.random.split(key)
    x = jax.random.normal(k_x, (B, T, IN_DIM), jnp.float32)
    params = init_params(k_p, IN_DIM, HID, OUT_DIM)
    fused = jax.tree_util.tree_map(jax.block_until_ready, fuse_params(params))

    mu, var = bayesian_lstm_forward(x, fused, HID)
    mu = jax.block_until_ready(mu)
    var = jax.block_until_ready(var)

    mu_ref, var_ref = reference_forward(x, params, HID)
    assert mu.shape == (B, OUT_DIM) and var.shape == (B, OUT_DIM)
    np.testing.assert_allclose(np.asarray(mu), np.asarray(mu_ref),
                               rtol=1e-5, atol=1e-5)
    np.testing.assert_allclose(np.asarray(var), np.asarray(var_ref),
                               rtol=1e-5, atol=1e-5)
    assert np.all(np.asarray(var) > 0.0)

    print("KERNEL_OK")
</pallas_src>

<mosaic_0001>
module attributes {stable_mosaic.version = 11 : i64} {
  func.func @bayesian_lstm_kernel(%arg0: memref<8x2x4xf32, #tpu.memory_space<vmem>>, %arg1: memref<4x128xf32, #tpu.memory_space<vmem>>, %arg2: memref<1x128xf32, #tpu.memory_space<vmem>>, %arg3: memref<32x256xf32, #tpu.memory_space<vmem>>, %arg4: memref<32x128xf32, #tpu.memory_space<vmem>>, %arg5: memref<1x128xf32, #tpu.memory_space<vmem>>, %arg6: memref<32x2xf32, #tpu.memory_space<vmem>>, %arg7: memref<1x2xf32, #tpu.memory_space<vmem>>, %arg8: memref<2x2xf32, #tpu.memory_space<vmem>>) attributes {dimension_semantics = [], scalar_prefetch = 0 : i64, scratch_operands = 0 : i64, tpu.core_type = #tpu.core_type<tc>} {
    %c0 = arith.constant 0 : index
    %c0_0 = arith.constant 0 : index
    %c0_1 = arith.constant 0 : index
    %0 = vector.load %arg0[%c0, %c0_0, %c0_1] : memref<8x2x4xf32, #tpu.memory_space<vmem>>, vector<8x2x4xf32>
    %1 = vector.shape_cast %0 : vector<8x2x4xf32> to vector<16x4xf32>
    %c0_2 = arith.constant 0 : index
    %c0_3 = arith.constant 0 : index
    %2 = vector.load %arg1[%c0_2, %c0_3] : memref<4x128xf32, #tpu.memory_space<vmem>>, vector<4x128xf32>
    %cst = arith.constant dense<0.000000e+00> : vector<16x128xf32>
    %3 = tpu.matmul %1, %2, %cst {dimension_numbers = #tpu.dot_dimension_numbers<[1], [0], [0], [1], [0, 0, 1, 1], [], []>} : vector<16x4xf32>, vector<4x128xf32>, vector<16x128xf32> -> vector<16x128xf32>
    %c0_4 = arith.constant 0 : index
    %c0_5 = arith.constant 0 : index
    %4 = vector.load %arg2[%c0_4, %c0_5] : memref<1x128xf32, #tpu.memory_space<vmem>>, vector<1x128xf32>
    %5 = vector.broadcast %4 : vector<1x128xf32> to vector<16x128xf32>
    %6 = arith.addf %3, %5 : vector<16x128xf32>
    %7 = vector.shape_cast %6 : vector<16x128xf32> to vector<8x2x128xf32>
    %c0_6 = arith.constant 0 : index
    %c0_7 = arith.constant 0 : index
    %8 = vector.load %arg3[%c0_6, %c0_7] : memref<32x256xf32, #tpu.memory_space<vmem>>, vector<32x256xf32>
    %c0_8 = arith.constant 0 : index
    %c0_9 = arith.constant 0 : index
    %9 = vector.load %arg4[%c0_8, %c0_9] : memref<32x128xf32, #tpu.memory_space<vmem>>, vector<32x128xf32>
    %c0_10 = arith.constant 0 : index
    %c0_11 = arith.constant 0 : index
    %10 = vector.load %arg5[%c0_10, %c0_11] : memref<1x128xf32, #tpu.memory_space<vmem>>, vector<1x128xf32>
    %cst_12 = arith.constant 0.000000e+00 : f32
    %11 = vector.broadcast %cst_12 : f32 to vector<2x32xf32>
    %cst_13 = arith.constant 0.000000e+00 : f32
    %12 = vector.broadcast %cst_13 : f32 to vector<2x128xf32>
    %13 = vector.extract_strided_slice %7 {offsets = [0, 0, 0], sizes = [1, 2, 128], strides = [1, 1, 1]} : vector<8x2x128xf32> to vector<1x2x128xf32>
    %14 = vector.shape_cast %13 : vector<1x2x128xf32> to vector<2x128xf32>
    %15 = arith.addf %14, %12 : vector<2x128xf32>
    %16 = arith.negf %15 : vector<2x128xf32>
    %17 = math.exp %16 : vector<2x128xf32>
    %cst_14 = arith.constant 1.000000e+00 : f32
    %18 = vector.broadcast %cst_14 : f32 to vector<2x128xf32>
    %19 = arith.addf %18, %17 : vector<2x128xf32>
    %20 = arith.divf %18, %19 : vector<2x128xf32>
    %21 = math.tanh %15 : vector<2x128xf32>
    %22 = vector.extract_strided_slice %20 {offsets = [0, 0], sizes = [2, 32], strides = [1, 1]} : vector<2x128xf32> to vector<2x32xf32>
    %23 = vector.extract_strided_slice %20 {offsets = [0, 32], sizes = [2, 32], strides = [1, 1]} : vector<2x128xf32> to vector<2x32xf32>
    %24 = vector.extract_strided_slice %21 {offsets = [0, 64], sizes = [2, 32], strides = [1, 1]} : vector<2x128xf32> to vector<2x32xf32>
    %25 = vector.extract_strided_slice %20 {offsets = [0, 96], sizes = [2, 32], strides = [1, 1]} : vector<2x128xf32> to vector<2x32xf32>
    %26 = arith.mulf %23, %11 : vector<2x32xf32>
    %27 = arith.mulf %22, %24 : vector<2x32xf32>
    %28 = arith.addf %26, %27 : vector<2x32xf32>
    %29 = math.tanh %28 : vector<2x32xf32>
    %30 = arith.mulf %25, %29 : vector<2x32xf32>
    %cst_15 = arith.constant dense<0.000000e+00> : vector<2x256xf32>
    %31 = tpu.matmul %30, %8, %cst_15 {dimension_numbers = #tpu.dot_dimension_numbers<[1], [0], [0], [1], [0, 0, 1, 1], [], []>} : vector<2x32xf32>, vector<32x256xf32>, vector<2x256xf32> -> vector<2x256xf32>
    %32 = vector.extract_strided_slice %31 {offsets = [0, 0], sizes = [2, 128], strides = [1, 1]} : vector<2x256xf32> to vector<2x128xf32>
    %33 = vector.extract_strided_slice %31 {offsets = [0, 128], sizes = [2, 128], strides = [1, 1]} : vector<2x256xf32> to vector<2x128xf32>
    %cst_16 = arith.constant dense<0.000000e+00> : vector<2x128xf32>
    %34 = tpu.matmul %11, %9, %cst_16 {dimension_numbers = #tpu.dot_dimension_numbers<[1], [0], [0], [1], [0, 0, 1, 1], [], []>} : vector<2x32xf32>, vector<32x128xf32>, vector<2x128xf32> -> vector<2x128xf32>
    %35 = arith.addf %33, %34 : vector<2x128xf32>
    %36 = vector.broadcast %10 : vector<1x128xf32> to vector<2x128xf32>
    %37 = arith.addf %35, %36 : vector<2x128xf32>
    %38 = arith.negf %37 : vector<2x128xf32>
    %39 = math.exp %38 : vector<2x128xf32>
    %cst_17 = arith.constant 1.000000e+00 : f32
    %40 = vector.broadcast %cst_17 : f32 to vector<2x128xf32>
    %41 = arith.addf %40, %39 : vector<2x128xf32>
    %42 = arith.divf %40, %41 : vector<2x128xf32>
    %43 = math.tanh %37 : vector<2x128xf32>
    %44 = vector.extract_strided_slice %42 {offsets = [0, 0], sizes = [2, 32], strides = [1, 1]} : vector<2x128xf32> to vector<2x32xf32>
    %45 = vector.extract_strided_slice %42 {offsets = [0, 32], sizes = [2, 32], strides = [1, 1]} : vector<2x128xf32> to vector<2x32xf32>
    %46 = vector.extract_strided_slice %43 {offsets = [0, 64], sizes = [2, 32], strides = [1, 1]} : vector<2x128xf32> to vector<2x32xf32>
    %47 = vector.extract_strided_slice %42 {offsets = [0, 96], sizes = [2, 32], strides = [1, 1]} : vector<2x128xf32> to vector<2x32xf32>
    %48 = arith.mulf %45, %11 : vector<2x32xf32>
    %49 = arith.mulf %44, %46 : vector<2x32xf32>
    %50 = arith.addf %48, %49 : vector<2x32xf32>
    %51 = math.tanh %50 : vector<2x32xf32>
    %52 = arith.mulf %47, %51 : vector<2x32xf32>
    %53 = vector.extract_strided_slice %7 {offsets = [1, 0, 0], sizes = [1, 2, 128], strides = [1, 1, 1]} : vector<8x2x128xf32> to vector<1x2x128xf32>
    %54 = vector.shape_cast %53 : vector<1x2x128xf32> to vector<2x128xf32>
    %55 = arith.addf %54, %32 : vector<2x128xf32>
    %56 = arith.negf %55 : vector<2x128xf32>
    %57 = math.exp %56 : vector<2x128xf32>
    %cst_18 = arith.constant 1.000000e+00 : f32
    %58 = vector.broadcast %cst_18 : f32 to vector<2x128xf32>
    %59 = arith.addf %58, %57 : vector<2x128xf32>
    %60 = arith.divf %58, %59 : vector<2x128xf32>
    %61 = math.tanh %55 : vector<2x128xf32>
    %62 = vector.extract_strided_slice %60 {offsets = [0, 0], sizes = [2, 32], strides = [1, 1]} : vector<2x128xf32> to vector<2x32xf32>
    %63 = vector.extract_strided_slice %60 {offsets = [0, 32], sizes = [2, 32], strides = [1, 1]} : vector<2x128xf32> to vector<2x32xf32>
    %64 = vector.extract_strided_slice %61 {offsets = [0, 64], sizes = [2, 32], strides = [1, 1]} : vector<2x128xf32> to vector<2x32xf32>
    %65 = vector.extract_strided_slice %60 {offsets = [0, 96], sizes = [2, 32], strides = [1, 1]} : vector<2x128xf32> to vector<2x32xf32>
    %66 = arith.mulf %63, %28 : vector<2x32xf32>
    %67 = arith.mulf %62, %64 : vector<2x32xf32>
    %68 = arith.addf %66, %67 : vector<2x32xf32>
    %69 = math.tanh %68 : vector<2x32xf32>
    %70 = arith.mulf %65, %69 : vector<2x32xf32>
    %cst_19 = arith.constant dense<0.000000e+00> : vector<2x256xf32>
    %71 = tpu.matmul %70, %8, %cst_19 {dimension_numbers = #tpu.dot_dimension_numbers<[1], [0], [0], [1], [0, 0, 1, 1], [], []>} : vector<2x32xf32>, vector<32x256xf32>, vector<2x256xf32> -> vector<2x256xf32>
    %72 = vector.extract_strided_slice %71 {offsets = [0, 0], sizes = [2, 128], strides = [1, 1]} : vector<2x256xf32> to vector<2x128xf32>
    %73 = vector.extract_strided_slice %71 {offsets = [0, 128], sizes = [2, 128], strides = [1, 1]} : vector<2x256xf32> to vector<2x128xf32>
    %cst_20 = arith.constant dense<0.000000e+00> : vector<2x128xf32>
    %74 = tpu.matmul %52, %9, %cst_20 {dimension_numbers = #tpu.dot_dimension_numbers<[1], [0], [0], [1], [0, 0, 1, 1], [], []>} : vector<2x32xf32>, vector<32x128xf32>, vector<2x128xf32> -> vector<2x128xf32>
    %75 = arith.addf %73, %74 : vector<2x128xf32>
    %76 = vector.broadcast %10 : vector<1x128xf32> to vector<2x128xf32>
    %77 = arith.addf %75, %76 : vector<2x128xf32>
    %78 = arith.negf %77 : vector<2x128xf32>
    %79 = math.exp %78 : vector<2x128xf32>
    %cst_21 = arith.constant 1.000000e+00 : f32
    %80 = vector.broadcast %cst_21 : f32 to vector<2x128xf32>
    %81 = arith.addf %80, %79 : vector<2x128xf32>
    %82 = arith.divf %80, %81 : vector<2x128xf32>
    %83 = math.tanh %77 : vector<2x128xf32>
    %84 = vector.extract_strided_slice %82 {offsets = [0, 0], sizes = [2, 32], strides = [1, 1]} : vector<2x128xf32> to vector<2x32xf32>
    %85 = vector.extract_strided_slice %82 {offsets = [0, 32], sizes = [2, 32], strides = [1, 1]} : vector<2x128xf32> to vector<2x32xf32>
    %86 = vector.extract_strided_slice %83 {offsets = [0, 64], sizes = [2, 32], strides = [1, 1]} : vector<2x128xf32> to vector<2x32xf32>
    %87 = vector.extract_strided_slice %82 {offsets = [0, 96], sizes = [2, 32], strides = [1, 1]} : vector<2x128xf32> to vector<2x32xf32>
    %88 = arith.mulf %85, %50 : vector<2x32xf32>
    %89 = arith.mulf %84, %86 : vector<2x32xf32>
    %90 = arith.addf %88, %89 : vector<2x32xf32>
    %91 = math.tanh %90 : vector<2x32xf32>
    %92 = arith.mulf %87, %91 : vector<2x32xf32>
    %93 = vector.extract_strided_slice %7 {offsets = [2, 0, 0], sizes = [1, 2, 128], strides = [1, 1, 1]} : vector<8x2x128xf32> to vector<1x2x128xf32>
    %94 = vector.shape_cast %93 : vector<1x2x128xf32> to vector<2x128xf32>
    %95 = arith.addf %94, %72 : vector<2x128xf32>
    %96 = arith.negf %95 : vector<2x128xf32>
    %97 = math.exp %96 : vector<2x128xf32>
    %cst_22 = arith.constant 1.000000e+00 : f32
    %98 = vector.broadcast %cst_22 : f32 to vector<2x128xf32>
    %99 = arith.addf %98, %97 : vector<2x128xf32>
    %100 = arith.divf %98, %99 : vector<2x128xf32>
    %101 = math.tanh %95 : vector<2x128xf32>
    %102 = vector.extract_strided_slice %100 {offsets = [0, 0], sizes = [2, 32], strides = [1, 1]} : vector<2x128xf32> to vector<2x32xf32>
    %103 = vector.extract_strided_slice %100 {offsets = [0, 32], sizes = [2, 32], strides = [1, 1]} : vector<2x128xf32> to vector<2x32xf32>
    %104 = vector.extract_strided_slice %101 {offsets = [0, 64], sizes = [2, 32], strides = [1, 1]} : vector<2x128xf32> to vector<2x32xf32>
    %105 = vector.extract_strided_slice %100 {offsets = [0, 96], sizes = [2, 32], strides = [1, 1]} : vector<2x128xf32> to vector<2x32xf32>
    %106 = arith.mulf %103, %68 : vector<2x32xf32>
    %107 = arith.mulf %102, %104 : vector<2x32xf32>
    %108 = arith.addf %106, %107 : vector<2x32xf32>
    %109 = math.tanh %108 : vector<2x32xf32>
    %110 = arith.mulf %105, %109 : vector<2x32xf32>
    %cst_23 = arith.constant dense<0.000000e+00> : vector<2x256xf32>
    %111 = tpu.matmul %110, %8, %cst_23 {dimension_numbers = #tpu.dot_dimension_numbers<[1], [0], [0], [1], [0, 0, 1, 1], [], []>} : vector<2x32xf32>, vector<32x256xf32>, vector<2x256xf32> -> vector<2x256xf32>
    %112 = vector.extract_strided_slice %111 {offsets = [0, 0], sizes = [2, 128], strides = [1, 1]} : vector<2x256xf32> to vector<2x128xf32>
    %113 = vector.extract_strided_slice %111 {offsets = [0, 128], sizes = [2, 128], strides = [1, 1]} : vector<2x256xf32> to vector<2x128xf32>
    %cst_24 = arith.constant dense<0.000000e+00> : vector<2x128xf32>
    %114 = tpu.matmul %92, %9, %cst_24 {dimension_numbers = #tpu.dot_dimension_numbers<[1], [0], [0], [1], [0, 0, 1, 1], [], []>} : vector<2x32xf32>, vector<32x128xf32>, vector<2x128xf32> -> vector<2x128xf32>
    %115 = arith.addf %113, %114 : vector<2x128xf32>
    %116 = vector.broadcast %10 : vector<1x128xf32> to vector<2x128xf32>
    %117 = arith.addf %115, %116 : vector<2x128xf32>
    %118 = arith.negf %117 : vector<2x128xf32>
    %119 = math.exp %118 : vector<2x128xf32>
    %cst_25 = arith.constant 1.000000e+00 : f32
    %120 = vector.broadcast %cst_25 : f32 to vector<2x128xf32>
    %121 = arith.addf %120, %119 : vector<2x128xf32>
    %122 = arith.divf %120, %121 : vector<2x128xf32>
    %123 = math.tanh %117 : vector<2x128xf32>
    %124 = vector.extract_strided_slice %122 {offsets = [0, 0], sizes = [2, 32], strides = [1, 1]} : vector<2x128xf32> to vector<2x32xf32>
    %125 = vector.extract_strided_slice %122 {offsets = [0, 32], sizes = [2, 32], strides = [1, 1]} : vector<2x128xf32> to vector<2x32xf32>
    %126 = vector.extract_strided_slice %123 {offsets = [0, 64], sizes = [2, 32], strides = [1, 1]} : vector<2x128xf32> to vector<2x32xf32>
    %127 = vector.extract_strided_slice %122 {offsets = [0, 96], sizes = [2, 32], strides = [1, 1]} : vector<2x128xf32> to vector<2x32xf32>
    %128 = arith.mulf %125, %90 : vector<2x32xf32>
    %129 = arith.mulf %124, %126 : vector<2x32xf32>
    %130 = arith.addf %128, %129 : vector<2x32xf32>
    %131 = math.tanh %130 : vector<2x32xf32>
    %132 = arith.mulf %127, %131 : vector<2x32xf32>
    %133 = vector.extract_strided_slice %7 {offsets = [3, 0, 0], sizes = [1, 2, 128], strides = [1, 1, 1]} : vector<8x2x128xf32> to vector<1x2x128xf32>
    %134 = vector.shape_cast %133 : vector<1x2x128xf32> to vector<2x128xf32>
    %135 = arith.addf %134, %112 : vector<2x128xf32>
    %136 = arith.negf %135 : vector<2x128xf32>
    %137 = math.exp %136 : vector<2x128xf32>
    %cst_26 = arith.constant 1.000000e+00 : f32
    %138 = vector.broadcast %cst_26 : f32 to vector<2x128xf32>
    %139 = arith.addf %138, %137 : vector<2x128xf32>
    %140 = arith.divf %138, %139 : vector<2x128xf32>
    %141 = math.tanh %135 : vector<2x128xf32>
    %142 = vector.extract_strided_slice %140 {offsets = [0, 0], sizes = [2, 32], strides = [1, 1]} : vector<2x128xf32> to vector<2x32xf32>
    %143 = vector.extract_strided_slice %140 {offsets = [0, 32], sizes = [2, 32], strides = [1, 1]} : vector<2x128xf32> to vector<2x32xf32>
    %144 = vector.extract_strided_slice %141 {offsets = [0, 64], sizes = [2, 32], strides = [1, 1]} : vector<2x128xf32> to vector<2x32xf32>
    %145 = vector.extract_strided_slice %140 {offsets = [0, 96], sizes = [2, 32], strides = [1, 1]} : vector<2x128xf32> to vector<2x32xf32>
    %146 = arith.mulf %143, %108 : vector<2x32xf32>
    %147 = arith.mulf %142, %144 : vector<2x32xf32>
    %148 = arith.addf %146, %147 : vector<2x32xf32>
    %149 = math.tanh %148 : vector<2x32xf32>
    %150 = arith.mulf %145, %149 : vector<2x32xf32>
    %cst_27 = arith.constant dense<0.000000e+00> : vector<2x256xf32>
    %151 = tpu.matmul %150, %8, %cst_27 {dimension_numbers = #tpu.dot_dimension_numbers<[1], [0], [0], [1], [0, 0, 1, 1], [], []>} : vector<2x32xf32>, vector<32x256xf32>, vector<2x256xf32> -> vector<2x256xf32>
    %152 = vector.extract_strided_slice %151 {offsets = [0, 0], sizes = [2, 128], strides = [1, 1]} : vector<2x256xf32> to vector<2x128xf32>
    %153 = vector.extract_strided_slice %151 {offsets = [0, 128], sizes = [2, 128], strides = [1, 1]} : vector<2x256xf32> to vector<2x128xf32>
    %cst_28 = arith.constant dense<0.000000e+00> : vector<2x128xf32>
    %154 = tpu.matmul %132, %9, %cst_28 {dimension_numbers = #tpu.dot_dimension_numbers<[1], [0], [0], [1], [0, 0, 1, 1], [], []>} : vector<2x32xf32>, vector<32x128xf32>, vector<2x128xf32> -> vector<2x128xf32>
    %155 = arith.addf %153, %154 : vector<2x128xf32>
    %156 = vector.broadcast %10 : vector<1x128xf32> to vector<2x128xf32>
    %157 = arith.addf %155, %156 : vector<2x128xf32>
    %158 = arith.negf %157 : vector<2x128xf32>
    %159 = math.exp %158 : vector<2x128xf32>
    %cst_29 = arith.constant 1.000000e+00 : f32
    %160 = vector.broadcast %cst_29 : f32 to vector<2x128xf32>
    %161 = arith.addf %160, %159 : vector<2x128xf32>
    %162 = arith.divf %160, %161 : vector<2x128xf32>
    %163 = math.tanh %157 : vector<2x128xf32>
    %164 = vector.extract_strided_slice %162 {offsets = [0, 0], sizes = [2, 32], strides = [1, 1]} : vector<2x128xf32> to vector<2x32xf32>
    %165 = vector.extract_strided_slice %162 {offsets = [0, 32], sizes = [2, 32], strides = [1, 1]} : vector<2x128xf32> to vector<2x32xf32>
    %166 = vector.extract_strided_slice %163 {offsets = [0, 64], sizes = [2, 32], strides = [1, 1]} : vector<2x128xf32> to vector<2x32xf32>
    %167 = vector.extract_strided_slice %162 {offsets = [0, 96], sizes = [2, 32], strides = [1, 1]} : vector<2x128xf32> to vector<2x32xf32>
    %168 = arith.mulf %165, %130 : vector<2x32xf32>
    %169 = arith.mulf %164, %166 : vector<2x32xf32>
    %170 = arith.addf %168, %169 : vector<2x32xf32>
    %171 = math.tanh %170 : vector<2x32xf32>
    %172 = arith.mulf %167, %171 : vector<2x32xf32>
    %173 = vector.extract_strided_slice %7 {offsets = [4, 0, 0], sizes = [1, 2, 128], strides = [1, 1, 1]} : vector<8x2x128xf32> to vector<1x2x128xf32>
    %174 = vector.shape_cast %173 : vector<1x2x128xf32> to vector<2x128xf32>
    %175 = arith.addf %174, %152 : vector<2x128xf32>
    %176 = arith.negf %175 : vector<2x128xf32>
    %177 = math.exp %176 : vector<2x128xf32>
    %cst_30 = arith.constant 1.000000e+00 : f32
    %178 = vector.broadcast %cst_30 : f32 to vector<2x128xf32>
    %179 = arith.addf %178, %177 : vector<2x128xf32>
    %180 = arith.divf %178, %179 : vector<2x128xf32>
    %181 = math.tanh %175 : vector<2x128xf32>
    %182 = vector.extract_strided_slice %180 {offsets = [0, 0], sizes = [2, 32], strides = [1, 1]} : vector<2x128xf32> to vector<2x32xf32>
    %183 = vector.extract_strided_slice %180 {offsets = [0, 32], sizes = [2, 32], strides = [1, 1]} : vector<2x128xf32> to vector<2x32xf32>
    %184 = vector.extract_strided_slice %181 {offsets = [0, 64], sizes = [2, 32], strides = [1, 1]} : vector<2x128xf32> to vector<2x32xf32>
    %185 = vector.extract_strided_slice %180 {offsets = [0, 96], sizes = [2, 32], strides = [1, 1]} : vector<2x128xf32> to vector<2x32xf32>
    %186 = arith.mulf %183, %148 : vector<2x32xf32>
    %187 = arith.mulf %182, %184 : vector<2x32xf32>
    %188 = arith.addf %186, %187 : vector<2x32xf32>
    %189 = math.tanh %188 : vector<2x32xf32>
    %190 = arith.mulf %185, %189 : vector<2x32xf32>
    %cst_31 = arith.constant dense<0.000000e+00> : vector<2x256xf32>
    %191 = tpu.matmul %190, %8, %cst_31 {dimension_numbers = #tpu.dot_dimension_numbers<[1], [0], [0], [1], [0, 0, 1, 1], [], []>} : vector<2x32xf32>, vector<32x256xf32>, vector<2x256xf32> -> vector<2x256xf32>
    %192 = vector.extract_strided_slice %191 {offsets = [0, 0], sizes = [2, 128], strides = [1, 1]} : vector<2x256xf32> to vector<2x128xf32>
    %193 = vector.extract_strided_slice %191 {offsets = [0, 128], sizes = [2, 128], strides = [1, 1]} : vector<2x256xf32> to vector<2x128xf32>
    %cst_32 = arith.constant dense<0.000000e+00> : vector<2x128xf32>
    %194 = tpu.matmul %172, %9, %cst_32 {dimension_numbers = #tpu.dot_dimension_numbers<[1], [0], [0], [1], [0, 0, 1, 1], [], []>} : vector<2x32xf32>, vector<32x128xf32>, vector<2x128xf32> -> vector<2x128xf32>
    %195 = arith.addf %193, %194 : vector<2x128xf32>
    %196 = vector.broadcast %10 : vector<1x128xf32> to vector<2x128xf32>
    %197 = arith.addf %195, %196 : vector<2x128xf32>
    %198 = arith.negf %197 : vector<2x128xf32>
    %199 = math.exp %198 : vector<2x128xf32>
    %cst_33 = arith.constant 1.000000e+00 : f32
    %200 = vector.broadcast %cst_33 : f32 to vector<2x128xf32>
    %201 = arith.addf %200, %199 : vector<2x128xf32>
    %202 = arith.divf %200, %201 : vector<2x128xf32>
    %203 = math.tanh %197 : vector<2x128xf32>
    %204 = vector.extract_strided_slice %202 {offsets = [0, 0], sizes = [2, 32], strides = [1, 1]} : vector<2x128xf32> to vector<2x32xf32>
    %205 = vector.extract_strided_slice %202 {offsets = [0, 32], sizes = [2, 32], strides = [1, 1]} : vector<2x128xf32> to vector<2x32xf32>
    %206 = vector.extract_strided_slice %203 {offsets = [0, 64], sizes = [2, 32], strides = [1, 1]} : vector<2x128xf32> to vector<2x32xf32>
    %207 = vector.extract_strided_slice %202 {offsets = [0, 96], sizes = [2, 32], strides = [1, 1]} : vector<2x128xf32> to vector<2x32xf32>
    %208 = arith.mulf %205, %170 : vector<2x32xf32>
    %209 = arith.mulf %204, %206 : vector<2x32xf32>
    %210 = arith.addf %208, %209 : vector<2x32xf32>
    %211 = math.tanh %210 : vector<2x32xf32>
    %212 = arith.mulf %207, %211 : vector<2x32xf32>
    %213 = vector.extract_strided_slice %7 {offsets = [5, 0, 0], sizes = [1, 2, 128], strides = [1, 1, 1]} : vector<8x2x128xf32> to vector<1x2x128xf32>
    %214 = vector.shape_cast %213 : vector<1x2x128xf32> to vector<2x128xf32>
    %215 = arith.addf %214, %192 : vector<2x128xf32>
    %216 = arith.negf %215 : vector<2x128xf32>
    %217 = math.exp %216 : vector<2x128xf32>
    %cst_34 = arith.constant 1.000000e+00 : f32
    %218 = vector.broadcast %cst_34 : f32 to vector<2x128xf32>
    %219 = arith.addf %218, %217 : vector<2x128xf32>
    %220 = arith.divf %218, %219 : vector<2x128xf32>
    %221 = math.tanh %215 : vector<2x128xf32>
    %222 = vector.extract_strided_slice %220 {offsets = [0, 0], sizes = [2, 32], strides = [1, 1]} : vector<2x128xf32> to vector<2x32xf32>
    %223 = vector.extract_strided_slice %220 {offsets = [0, 32], sizes = [2, 32], strides = [1, 1]} : vector<2x128xf32> to vector<2x32xf32>
    %224 = vector.extract_strided_slice %221 {offsets = [0, 64], sizes = [2, 32], strides = [1, 1]} : vector<2x128xf32> to vector<2x32xf32>
    %225 = vector.extract_strided_slice %220 {offsets = [0, 96], sizes = [2, 32], strides = [1, 1]} : vector<2x128xf32> to vector<2x32xf32>
    %226 = arith.mulf %223, %188 : vector<2x32xf32>
    %227 = arith.mulf %222, %224 : vector<2x32xf32>
    %228 = arith.addf %226, %227 : vector<2x32xf32>
    %229 = math.tanh %228 : vector<2x32xf32>
    %230 = arith.mulf %225, %229 : vector<2x32xf32>
    %cst_35 = arith.constant dense<0.000000e+00> : vector<2x256xf32>
    %231 = tpu.matmul %230, %8, %cst_35 {dimension_numbers = #tpu.dot_dimension_numbers<[1], [0], [0], [1], [0, 0, 1, 1], [], []>} : vector<2x32xf32>, vector<32x256xf32>, vector<2x256xf32> -> vector<2x256xf32>
    %232 = vector.extract_strided_slice %231 {offsets = [0, 0], sizes = [2, 128], strides = [1, 1]} : vector<2x256xf32> to vector<2x128xf32>
    %233 = vector.extract_strided_slice %231 {offsets = [0, 128], sizes = [2, 128], strides = [1, 1]} : vector<2x256xf32> to vector<2x128xf32>
    %cst_36 = arith.constant dense<0.000000e+00> : vector<2x128xf32>
    %234 = tpu.matmul %212, %9, %cst_36 {dimension_numbers = #tpu.dot_dimension_numbers<[1], [0], [0], [1], [0, 0, 1, 1], [], []>} : vector<2x32xf32>, vector<32x128xf32>, vector<2x128xf32> -> vector<2x128xf32>
    %235 = arith.addf %233, %234 : vector<2x128xf32>
    %236 = vector.broadcast %10 : vector<1x128xf32> to vector<2x128xf32>
    %237 = arith.addf %235, %236 : vector<2x128xf32>
    %238 = arith.negf %237 : vector<2x128xf32>
    %239 = math.exp %238 : vector<2x128xf32>
    %cst_37 = arith.constant 1.000000e+00 : f32
    %240 = vector.broadcast %cst_37 : f32 to vector<2x128xf32>
    %241 = arith.addf %240, %239 : vector<2x128xf32>
    %242 = arith.divf %240, %241 : vector<2x128xf32>
    %243 = math.tanh %237 : vector<2x128xf32>
    %244 = vector.extract_strided_slice %242 {offsets = [0, 0], sizes = [2, 32], strides = [1, 1]} : vector<2x128xf32> to vector<2x32xf32>
    %245 = vector.extract_strided_slice %242 {offsets = [0, 32], sizes = [2, 32], strides = [1, 1]} : vector<2x128xf32> to vector<2x32xf32>
    %246 = vector.extract_strided_slice %243 {offsets = [0, 64], sizes = [2, 32], strides = [1, 1]} : vector<2x128xf32> to vector<2x32xf32>
    %247 = vector.extract_strided_slice %242 {offsets = [0, 96], sizes = [2, 32], strides = [1, 1]} : vector<2x128xf32> to vector<2x32xf32>
    %248 = arith.mulf %245, %210 : vector<2x32xf32>
    %249 = arith.mulf %244, %246 : vector<2x32xf32>
    %250 = arith.addf %248, %249 : vector<2x32xf32>
    %251 = math.tanh %250 : vector<2x32xf32>
    %252 = arith.mulf %247, %251 : vector<2x32xf32>
    %253 = vector.extract_strided_slice %7 {offsets = [6, 0, 0], sizes = [1, 2, 128], strides = [1, 1, 1]} : vector<8x2x128xf32> to vector<1x2x128xf32>
    %254 = vector.shape_cast %253 : vector<1x2x128xf32> to vector<2x128xf32>
    %255 = arith.addf %254, %232 : vector<2x128xf32>
    %256 = arith.negf %255 : vector<2x128xf32>
    %257 = math.exp %256 : vector<2x128xf32>
    %cst_38 = arith.constant 1.000000e+00 : f32
    %258 = vector.broadcast %cst_38 : f32 to vector<2x128xf32>
    %259 = arith.addf %258, %257 : vector<2x128xf32>
    %260 = arith.divf %258, %259 : vector<2x128xf32>
    %261 = math.tanh %255 : vector<2x128xf32>
    %262 = vector.extract_strided_slice %260 {offsets = [0, 0], sizes = [2, 32], strides = [1, 1]} : vector<2x128xf32> to vector<2x32xf32>
    %263 = vector.extract_strided_slice %260 {offsets = [0, 32], sizes = [2, 32], strides = [1, 1]} : vector<2x128xf32> to vector<2x32xf32>
    %264 = vector.extract_strided_slice %261 {offsets = [0, 64], sizes = [2, 32], strides = [1, 1]} : vector<2x128xf32> to vector<2x32xf32>
    %265 = vector.extract_strided_slice %260 {offsets = [0, 96], sizes = [2, 32], strides = [1, 1]} : vector<2x128xf32> to vector<2x32xf32>
    %266 = arith.mulf %263, %228 : vector<2x32xf32>
    %267 = arith.mulf %262, %264 : vector<2x32xf32>
    %268 = arith.addf %266, %267 : vector<2x32xf32>
    %269 = math.tanh %268 : vector<2x32xf32>
    %270 = arith.mulf %265, %269 : vector<2x32xf32>
    %cst_39 = arith.constant dense<0.000000e+00> : vector<2x256xf32>
    %271 = tpu.matmul %270, %8, %cst_39 {dimension_numbers = #tpu.dot_dimension_numbers<[1], [0], [0], [1], [0, 0, 1, 1], [], []>} : vector<2x32xf32>, vector<32x256xf32>, vector<2x256xf32> -> vector<2x256xf32>
    %272 = vector.extract_strided_slice %271 {offsets = [0, 0], sizes = [2, 128], strides = [1, 1]} : vector<2x256xf32> to vector<2x128xf32>
    %273 = vector.extract_strided_slice %271 {offsets = [0, 128], sizes = [2, 128], strides = [1, 1]} : vector<2x256xf32> to vector<2x128xf32>
    %cst_40 = arith.constant dense<0.000000e+00> : vector<2x128xf32>
    %274 = tpu.matmul %252, %9, %cst_40 {dimension_numbers = #tpu.dot_dimension_numbers<[1], [0], [0], [1], [0, 0, 1, 1], [], []>} : vector<2x32xf32>, vector<32x128xf32>, vector<2x128xf32> -> vector<2x128xf32>
    %275 = arith.addf %273, %274 : vector<2x128xf32>
    %276 = vector.broadcast %10 : vector<1x128xf32> to vector<2x128xf32>
    %277 = arith.addf %275, %276 : vector<2x128xf32>
    %278 = arith.negf %277 : vector<2x128xf32>
    %279 = math.exp %278 : vector<2x128xf32>
    %cst_41 = arith.constant 1.000000e+00 : f32
    %280 = vector.broadcast %cst_41 : f32 to vector<2x128xf32>
    %281 = arith.addf %280, %279 : vector<2x128xf32>
    %282 = arith.divf %280, %281 : vector<2x128xf32>
    %283 = math.tanh %277 : vector<2x128xf32>
    %284 = vector.extract_strided_slice %282 {offsets = [0, 0], sizes = [2, 32], strides = [1, 1]} : vector<2x128xf32> to vector<2x32xf32>
    %285 = vector.extract_strided_slice %282 {offsets = [0, 32], sizes = [2, 32], strides = [1, 1]} : vector<2x128xf32> to vector<2x32xf32>
    %286 = vector.extract_strided_slice %283 {offsets = [0, 64], sizes = [2, 32], strides = [1, 1]} : vector<2x128xf32> to vector<2x32xf32>
    %287 = vector.extract_strided_slice %282 {offsets = [0, 96], sizes = [2, 32], strides = [1, 1]} : vector<2x128xf32> to vector<2x32xf32>
    %288 = arith.mulf %285, %250 : vector<2x32xf32>
    %289 = arith.mulf %284, %286 : vector<2x32xf32>
    %290 = arith.addf %288, %289 : vector<2x32xf32>
    %291 = math.tanh %290 : vector<2x32xf32>
    %292 = arith.mulf %287, %291 : vector<2x32xf32>
    %293 = vector.extract_strided_slice %7 {offsets = [7, 0, 0], sizes = [1, 2, 128], strides = [1, 1, 1]} : vector<8x2x128xf32> to vector<1x2x128xf32>
    %294 = vector.shape_cast %293 : vector<1x2x128xf32> to vector<2x128xf32>
    %295 = arith.addf %294, %272 : vector<2x128xf32>
    %296 = arith.negf %295 : vector<2x128xf32>
    %297 = math.exp %296 : vector<2x128xf32>
    %cst_42 = arith.constant 1.000000e+00 : f32
    %298 = vector.broadcast %cst_42 : f32 to vector<2x128xf32>
    %299 = arith.addf %298, %297 : vector<2x128xf32>
    %300 = arith.divf %298, %299 : vector<2x128xf32>
    %301 = math.tanh %295 : vector<2x128xf32>
    %302 = vector.extract_strided_slice %300 {offsets = [0, 0], sizes = [2, 32], strides = [1, 1]} : vector<2x128xf32> to vector<2x32xf32>
    %303 = vector.extract_strided_slice %300 {offsets = [0, 32], sizes = [2, 32], strides = [1, 1]} : vector<2x128xf32> to vector<2x32xf32>
    %304 = vector.extract_strided_slice %301 {offsets = [0, 64], sizes = [2, 32], strides = [1, 1]} : vector<2x128xf32> to vector<2x32xf32>
    %305 = vector.extract_strided_slice %300 {offsets = [0, 96], sizes = [2, 32], strides = [1, 1]} : vector<2x128xf32> to vector<2x32xf32>
    %306 = arith.mulf %303, %268 : vector<2x32xf32>
    %307 = arith.mulf %302, %304 : vector<2x32xf32>
    %308 = arith.addf %306, %307 : vector<2x32xf32>
    %309 = math.tanh %308 : vector<2x32xf32>
    %310 = arith.mulf %305, %309 : vector<2x32xf32>
    %cst_43 = arith.constant dense<0.000000e+00> : vector<2x256xf32>
    %311 = tpu.matmul %310, %8, %cst_43 {dimension_numbers = #tpu.dot_dimension_numbers<[1], [0], [0], [1], [0, 0, 1, 1], [], []>} : vector<2x32xf32>, vector<32x256xf32>, vector<2x256xf32> -> vector<2x256xf32>
    %312 = vector.extract_strided_slice %311 {offsets = [0, 128], sizes = [2, 128], strides = [1, 1]} : vector<2x256xf32> to vector<2x128xf32>
    %cst_44 = arith.constant dense<0.000000e+00> : vector<2x128xf32>
    %313 = tpu.matmul %292, %9, %cst_44 {dimension_numbers = #tpu.dot_dimension_numbers<[1], [0], [0], [1], [0, 0, 1, 1], [], []>} : vector<2x32xf32>, vector<32x128xf32>, vector<2x128xf32> -> vector<2x128xf32>
    %314 = arith.addf %312, %313 : vector<2x128xf32>
    %315 = vector.broadcast %10 : vector<1x128xf32> to vector<2x128xf32>
    %316 = arith.addf %314, %315 : vector<2x128xf32>
    %317 = arith.negf %316 : vector<2x128xf32>
    %318 = math.exp %317 : vector<2x128xf32>
    %cst_45 = arith.constant 1.000000e+00 : f32
    %319 = vector.broadcast %cst_45 : f32 to vector<2x128xf32>
    %320 = arith.addf %319, %318 : vector<2x128xf32>
    %321 = arith.divf %319, %320 : vector<2x128xf32>
    %322 = math.tanh %316 : vector<2x128xf32>
    %323 = vector.extract_strided_slice %321 {offsets = [0, 0], sizes = [2, 32], strides = [1, 1]} : vector<2x128xf32> to vector<2x32xf32>
    %324 = vector.extract_strided_slice %321 {offsets = [0, 32], sizes = [2, 32], strides = [1, 1]} : vector<2x128xf32> to vector<2x32xf32>
    %325 = vector.extract_strided_slice %322 {offsets = [0, 64], sizes = [2, 32], strides = [1, 1]} : vector<2x128xf32> to vector<2x32xf32>
    %326 = vector.extract_strided_slice %321 {offsets = [0, 96], sizes = [2, 32], strides = [1, 1]} : vector<2x128xf32> to vector<2x32xf32>
    %327 = arith.mulf %324, %290 : vector<2x32xf32>
    %328 = arith.mulf %323, %325 : vector<2x32xf32>
    %329 = arith.addf %327, %328 : vector<2x32xf32>
    %330 = math.tanh %329 : vector<2x32xf32>
    %331 = arith.mulf %326, %330 : vector<2x32xf32>
    %c0_46 = arith.constant 0 : index
    %c0_47 = arith.constant 0 : index
    %332 = vector.load %arg6[%c0_46, %c0_47] : memref<32x2xf32, #tpu.memory_space<vmem>>, vector<32x2xf32>
    %cst_48 = arith.constant dense<0.000000e+00> : vector<2x2xf32>
    %333 = tpu.matmul %331, %332, %cst_48 {dimension_numbers = #tpu.dot_dimension_numbers<[1], [0], [0], [1], [0, 0, 1, 1], [], []>} : vector<2x32xf32>, vector<32x2xf32>, vector<2x2xf32> -> vector<2x2xf32>
    %c0_49 = arith.constant 0 : index
    %c0_50 = arith.constant 0 : index
    %334 = vector.load %arg7[%c0_49, %c0_50] : memref<1x2xf32, #tpu.memory_space<vmem>>, vector<1x2xf32>
    %335 = vector.broadcast %334 : vector<1x2xf32> to vector<2x2xf32>
    %336 = arith.addf %333, %335 : vector<2x2xf32>
    %cst_51 = arith.constant 0.000000e+00 : f32
    %337 = vector.broadcast %cst_51 : f32 to vector<2x2xf32>
    %338 = arith.maximumf %336, %337 : vector<2x2xf32>
    %339 = vector.broadcast %cst_51 : f32 to vector<2x2xf32>
    %340 = arith.subf %336, %339 : vector<2x2xf32>
    %341 = arith.cmpf one, %340, %340 : vector<2x2xf32>
    %342 = vector.broadcast %cst_51 : f32 to vector<2x2xf32>
    %343 = arith.addf %336, %342 : vector<2x2xf32>
    %344 = math.absf %340 : vector<2x2xf32>
    %cst_52 = arith.constant 0.000000e+00 : f32
    %345 = vector.broadcast %cst_52 : f32 to vector<2x2xf32>
    %346 = arith.subf %345, %344 : vector<2x2xf32>
    %347 = math.exp %346 : vector<2x2xf32>
    %348 = math.log1p %347 : vector<2x2xf32>
    %349 = arith.addf %338, %348 : vector<2x2xf32>
    %350 = arith.select %341, %343, %349 : vector<2x2xi1>, vector<2x2xf32>
    %cst_53 = arith.constant 9.99999997E-7 : f32
    %351 = vector.broadcast %cst_53 : f32 to vector<2x2xf32>
    %352 = arith.addf %350, %351 : vector<2x2xf32>
    %353 = tpu.iota {dimensions = array<i32: 1>} : vector<2x2xi32>
    %c1_i32 = arith.constant 1 : i32
    %354 = vector.broadcast %c1_i32 : i32 to vector<2x2xi32>
    %355 = arith.cmpi slt, %353, %354 : vector<2x2xi32>
    %356 = arith.select %355, %336, %352 : vector<2x2xi1>, vector<2x2xf32>
    %c0_54 = arith.constant 0 : index
    %c0_55 = arith.constant 0 : index
    %357 = vector.load %arg8[%c0_54, %c0_55] : memref<2x2xf32, #tpu.memory_space<vmem>>, vector<2x2xf32>
    tpu.vector_store %arg8[%c0_54, %c0_55], %356 {strides = array<i32>} : memref<2x2xf32, #tpu.memory_space<vmem>>, vector<2x2xf32>,
    return
  }
}

</mosaic_0001>

<llo_original>
// kernel: bayesian_lstm_forward.1
$region0: #{bayesian_lstm_forward.1}
  #allocation0 [shape = 'u32[]', space=smem, size = 0x4, offset = 0x4, fixed_abs, tag = 'smem constant byte address 0x4 - core index']
  #allocation1 [shape = 'u32[144,128]{1,0:T(1,128)}', space=vmem, size = 0x12000, scoped, tag = 'internal scratch']
  %s0 = inlined_call_operand.vmem [shape: f32[8,2,4], index: 0, kind: input, shape index: {}]
  %s1 = inlined_call_operand.vmem [shape: f32[4,128], index: 1, kind: input, shape index: {}]
  %s2 = inlined_call_operand.vmem [shape: f32[1,128], index: 2, kind: input, shape index: {}]
  %s3 = inlined_call_operand.vmem [shape: f32[32,256], index: 3, kind: input, shape index: {}]
  %s4 = inlined_call_operand.hbm [shape: f32[32,128], index: 4, kind: input, shape index: {}]
  %s5 = inlined_call_operand.vmem [shape: f32[1,128], index: 5, kind: input, shape index: {}]
  %s6 = inlined_call_operand.vmem [shape: f32[32,2], index: 6, kind: input, shape index: {}]
  %s7 = inlined_call_operand.vmem [shape: f32[1,2], index: 7, kind: input, shape index: {}]
  %s8 = inlined_call_operand.vmem [shape: f32[2,2], index: 8, kind: output, shape index: {}]
  %s9 = sld [smem:[#allocation0]]
  $region46: #{bayesian_lstm_forward.1} parent=0
    _
  %s11 = ssub.s32 1, %s9
  %s12 = scalar_select 0, %s11, %s9
  $region1: #{bayesian_lstm_forward.1} parent=0
    #allocation2 [shape = 'u8[16384]{0}', space=vmem, size = 0x4000, scoped, tag = 'input window, operand 4, single buffered']
    #allocation3 [shape = 's32[1]{0}', space=sflag, size = 0x4, scoped, tag = 'scoped memory for bayesian_lstm_forward.1']
    %13 = vsyncpa [#allocation3], 0
    // Predicated region
    $region2: #{bayesian_lstm_forward.1} parent=1 // pred_check
      _
    $region3: #{bayesian_lstm_forward.1} parent=1 // pred_check_branch
      %15 = sbr.rel (0) target = $region5
    $region4: #{bayesian_lstm_forward.1} parent=1 // pred_region
      _
    $region5: #{bayesian_lstm_forward.1} parent=1 // pred_fallthru
      _
    // Predicated region
    $region6: #{bayesian_lstm_forward.1} parent=1 // pred_check
      _
    $region7: #{bayesian_lstm_forward.1} parent=1 // pred_check_branch
      %17 = sbr.rel (0) target = $region9
    $region8: #{bayesian_lstm_forward.1} parent=1 // pred_region
      _
    $region9: #{bayesian_lstm_forward.1} parent=1 // pred_fallthru
      _
    // Predicated region
    $region10: #{bayesian_lstm_forward.1} parent=1 // pred_check
      _
    $region11: #{bayesian_lstm_forward.1} parent=1 // pred_check_branch
      %19 = sbr.rel (0) target = $region13
    $region12: #{bayesian_lstm_forward.1} parent=1 // pred_region
      _
    $region13: #{bayesian_lstm_forward.1} parent=1 // pred_fallthru
      _
    // Predicated region
    $region14: #{bayesian_lstm_forward.1} parent=1 // pred_check
      _
    $region15: #{bayesian_lstm_forward.1} parent=1 // pred_check_branch
      %21 = sbr.rel (0) target = $region17
    $region16: #{bayesian_lstm_forward.1} parent=1 // pred_region
      _
    $region17: #{bayesian_lstm_forward.1} parent=1 // pred_fallthru
      _
    // Predicated region
    $region18: #{bayesian_lstm_forward.1} parent=1 // pred_check
      _
    $region19: #{bayesian_lstm_forward.1} parent=1 // pred_check_branch
      %23 = sbr.rel (0) target = $region21
    $region20: #{bayesian_lstm_forward.1} parent=1 // pred_region
      %s25 = ssub.s32 512, 512
      %26 = vsyncadd [#allocation3], %s25
      %s27 = sshll.u32 [#allocation2], 4
      %s28 = int_to_ptr.vmem [resolvable:$true] %s27
      %33 = dma.hbm_to_vmem [thread:$0]  %s4, 512, %s28, [#allocation3], 128, 128, 8
    $region21: #{bayesian_lstm_forward.1} parent=1 // pred_fallthru
      _
    // Predicated region
    $region22: #{bayesian_lstm_forward.1} parent=1 // pred_check
      _
    $region23: #{bayesian_lstm_forward.1} parent=1 // pred_check_branch
      %35 = sbr.rel (0) target = $region25
    $region24: #{bayesian_lstm_forward.1} parent=1 // pred_region
      _
    $region25: #{bayesian_lstm_forward.1} parent=1 // pred_fallthru
      _
    // Predicated region
    $region26: #{bayesian_lstm_forward.1} parent=1 // pred_check
      _
    $region27: #{bayesian_lstm_forward.1} parent=1 // pred_check_branch
      %37 = sbr.rel (0) target = $region29
    $region28: #{bayesian_lstm_forward.1} parent=1 // pred_region
      _
    $region29: #{bayesian_lstm_forward.1} parent=1 // pred_fallthru
      _
    // Predicated region
    $region30: #{bayesian_lstm_forward.1} parent=1 // pred_check
      _
    $region31: #{bayesian_lstm_forward.1} parent=1 // pred_check_branch
      %39 = sbr.rel (0) target = $region33
    $region32: #{bayesian_lstm_forward.1} parent=1 // pred_region
      _
    $region33: #{bayesian_lstm_forward.1} parent=1 // pred_fallthru
      _
    // Predicated region
    $region34: #{bayesian_lstm_forward.1} parent=1 // pred_check
      _
    $region35: #{bayesian_lstm_forward.1} parent=1 // pred_check_branch
      %41 = sbr.rel (0) target = $region37
    $region36: #{bayesian_lstm_forward.1} parent=1 // pred_region
      %42 = dma.done [#allocation3], 512
    $region37: #{bayesian_lstm_forward.1} parent=1 // pred_fallthru
      _
    %v43 = vld [vmem:[%s0] sm:$0x3]
    %v44 = vld [vmem:[%s0 + $0x2] sm:$0x3]
    %v45 = vld [vmem:[%s0 + $0x4] sm:$0x3]
    %v46 = vld [vmem:[%s0 + $0x6] sm:$0x3]
    %v47 = vld [vmem:[%s0 + $0x8] sm:$0x3]
    %v48 = vld [vmem:[%s0 + $0xa] sm:$0x3]
    %v49 = vld [vmem:[%s0 + $0xc] sm:$0x3]
    %v50 = vld [vmem:[%s0 + $0xe] sm:$0x3]
    %v51 = vld [vmem:[%s1] sm:$0xf]
    %v52 = vld [vmem:[%s2] sm:$0x1]
    %v54 = vlaneseq
    %v55 = vshrl.u32 %v54, 7
    %v56 = vsub.s32 0, %v55
    %v57 = vrot.slane %v52, %v56
    %v67 = vcombine.low %v43, %v44
    %v68 = vcombine.low %v45, %v46
    %v70 = vunpack.c.l.s4 1983009808
    %v71 = vunpack.c.0.s8 %v70
    %v72 = vlaneseq
    %v73 = vshrl.u32 %v72, 7
    %v74 = vsub.s32 %v71, %v73
    %v75 = vrot.slane %v67, %v74
    %v77 = vunpack.c.l.s4 1983009808
    %v78 = vunpack.c.0.s8 %v77
    %v79 = vlaneseq
    %v80 = vshrl.u32 %v79, 7
    %v81 = vsub.s32 %v78, %v80
    %v82 = vrot.slane %v68, %v81
    %v83 = vcombine.low %v75, %v82
    %v84 = vcombine.low %v47, %v48
    %v85 = vcombine.low %v49, %v50
    %v87 = vunpack.c.l.s4 1983009808
    %v88 = vunpack.c.0.s8 %v87
    %v89 = vlaneseq
    %v90 = vshrl.u32 %v89, 7
    %v91 = vsub.s32 %v88, %v90
    %v92 = vrot.slane %v84, %v91
    %v94 = vunpack.c.l.s4 1983009808
    %v95 = vunpack.c.0.s8 %v94
    %v96 = vlaneseq
    %v97 = vshrl.u32 %v96, 7
    %v98 = vsub.s32 %v95, %v97
    %v99 = vrot.slane %v85, %v98
    %v100 = vcombine.low %v92, %v99
    %vm101 = vcmask 31744
    %v102 = vsel %vm101, %v83, 0
    %v104 = vsel %vm101, %v100, 0
    %vm106 = vcmask 1043456
    %v108 = vsel %vm106, %v51, 0
    %110 = vmatprep.subr.mxu0 0.0
    %111 = vmatpush1.msra.mxu0 %v108
    %112 = vmatprep.subr.mxu0 0.0
    %113 = vmatpush1.msra.mxu0 0.0
    %114 = vmatprep.subr.mxu0 0.0
    %115 = vmatpush1.msra.mxu0 0.0
    %116 = vmatprep.subr.mxu0 0.0
    %117 = vmatpush1.msra.mxu0 0.0
    %118 = vmatprep.subr.mxu0 0.0
    %119 = vmatpush1.msra.mxu0 0.0
    %120 = vmatprep.subr.mxu0 0.0
    %121 = vmatpush1.msra.mxu0 0.0
    %122 = vmatprep.subr.mxu0 0.0
    %123 = vmatpush1.msra.mxu0 0.0
    %124 = vmatprep.subr.mxu0 0.0
    %125 = vmatpush1.msra.mxu0 0.0
    %126 = vmatprep.subr.mxu0 0.0
    %127 = vmatpush1.msra.mxu0 0.0
    %128 = vmatprep.subr.mxu0 0.0
    %129 = vmatpush1.msra.mxu0 0.0
    %130 = vmatprep.subr.mxu0 0.0
    %131 = vmatpush1.msra.mxu0 0.0
    %132 = vmatprep.subr.mxu0 0.0
    %133 = vmatpush1.msra.mxu0 0.0
    %134 = vmatprep.subr.mxu0 0.0
    %135 = vmatpush1.msra.mxu0 0.0
    %136 = vmatprep.subr.mxu0 0.0
    %137 = vmatpush1.msra.mxu0 0.0
    %138 = vmatprep.subr.mxu0 0.0
    %139 = vmatpush1.msra.mxu0 0.0
    %140 = vmatprep.subr.mxu0 0.0
    %141 = vmatpush1.msra.mxu0 0.0
    %142 = vmatprep.subr.mxu0 0.0
    %143 = vmatpush1.msra.mxu0 0.0
    %144 = vmatprep.subr.mxu0 0.0
    %145 = vmatpush1.msra.mxu0 0.0
    %146 = vmatprep.subr.mxu0 0.0
    %147 = vmatpush1.msra.mxu0 0.0
    %148 = vmatprep.subr.mxu0 0.0
    %149 = vmatpush1.msra.mxu0 0.0
    %150 = vmatprep.subr.mxu0 0.0
    %151 = vmatpush1.msra.mxu0 0.0
    %152 = vmatprep.subr.mxu0 0.0
    %153 = vmatpush1.msra.mxu0 0.0
    %154 = vmatprep.subr.mxu0 0.0
    %155 = vmatpush1.msra.mxu0 0.0
    %156 = vmatprep.subr.mxu0 0.0
    %157 = vmatpush1.msra.mxu0 0.0
    %158 = vmatprep.subr.mxu0 0.0
    %159 = vmatpush1.msra.mxu0 0.0
    %160 = vmatprep.subr.mxu0 0.0
    %161 = vmatpush1.msra.mxu0 0.0
    %162 = vmatprep.subr.mxu0 0.0
    %163 = vmatpush1.msra.mxu0 0.0
    %164 = vmatprep.subr.mxu0 0.0
    %165 = vmatpush1.msra.mxu0 0.0
    %166 = vmatprep.subr.mxu0 0.0
    %167 = vmatpush1.msra.mxu0 0.0
    %168 = vmatprep.subr.mxu0 0.0
    %169 = vmatpush1.msra.mxu0 0.0
    %170 = vmatprep.subr.mxu0 0.0
    %171 = vmatpush1.msra.mxu0 0.0
    %172 = vmatprep.subr.mxu0 0.0
    %173 = vmatpush1.msra.mxu0 0.0
    %174 = vmatprep.mubr.f32.mxu0 0.0
    %175 = vmatmul.mubr.f32.gmra.mrb[0].mxu0 %v102
    %v176 = vpop.f32.mrb[0].mxu0
    %v177 = vadd.f32 %v57, %v176
    %v178 = vpop.f32.mrb[0].mxu0
    %179 = vmatprep.mubr.f32.mxu0 0.0
    %180 = vmatmul.mubr.f32.gmra.mrb[0].mxu0 %v104
    %v181 = vpop.f32.mrb[0].mxu0
    %v182 = vadd.f32 %v57, %v181
    %v183 = vpop.f32.mrb[0].mxu0
    %184 = vdwg.mxu0
    %v187 = vcombine.high %v177, %v177
    %v189 = vunpack.c.l.s4 1983009808
    %v190 = vunpack.c.0.s8 %v189
    %v191 = vlaneseq
    %v192 = vshrl.u32 %v191, 7
    %v193 = vsub.s32 %v190, %v192
    %v194 = vrot.slane %v177, %v193
    %v196 = vunpack.c.l.s4 1983009808
    %v197 = vunpack.c.0.s8 %v196
    %v198 = vlaneseq
    %v199 = vshrl.u32 %v198, 7
    %v200 = vsub.s32 %v197, %v199
    %v201 = vrot.slane %v187, %v200
    %v202 = vcombine.high %v194, %v194
    %v203 = vcombine.high %v201, %v201
    %v204 = vcombine.high %v182, %v182
    %v206 = vunpack.c.l.s4 1983009808
    %v207 = vunpack.c.0.s8 %v206
    %v208 = vlaneseq
    %v209 = vshrl.u32 %v208, 7
    %v210 = vsub.s32 %v207, %v209
    %v211 = vrot.slane %v182, %v210
    %v213 = vunpack.c.l.s4 1983009808
    %v214 = vunpack.c.0.s8 %v213
    %v215 = vlaneseq
    %v216 = vshrl.u32 %v215, 7
    %v217 = vsub.s32 %v214, %v216
    %v218 = vrot.slane %v204, %v217
    %v219 = vcombine.high %v211, %v211
    %v220 = vcombine.high %v218, %v218
    %v229 = vld [vmem:[%s3] sm:$0xff]
    %v230 = vld [vmem:[%s3 + $0x8] sm:$0xff]
    %v231 = vld [vmem:[%s3 + $0x10] sm:$0xff]
    %v232 = vld [vmem:[%s3 + $0x18] sm:$0xff]
    %v233 = vld [vmem:[%s3 + $0x20] sm:$0xff]
    %v234 = vld [vmem:[%s3 + $0x28] sm:$0xff]
    %v235 = vld [vmem:[%s3 + $0x30] sm:$0xff]
    %v236 = vld [vmem:[%s3 + $0x38] sm:$0xff]
    %v237 = vld [vmem:[#allocation2] sm:$0xff]
    %v238 = vld [vmem:[#allocation2 + $0x8] sm:$0xff]
    %v239 = vld [vmem:[#allocation2 + $0x10] sm:$0xff]
    %v240 = vld [vmem:[#allocation2 + $0x18] sm:$0xff]
    %v241 = vld [vmem:[%s5] sm:$0x1]
    %v242 = vadd.f32 %v194, 0.0
    %v243 = vxor.u32 %v242, 2147483648
    %v244 = vmul.f32 %v243, 1.442695
    %v245 = vpow.pop %v244
    %v246 = vadd.f32 %v245, 1.0
    %v247 = vrcp.pop %v246
    %v248 = vmul.f32 1.0, %v247
    %v249 = vtanh.pop %v242
    %v250 = vmul.f32 %v248, 0.0
    %252 = vrot.lane.b32.xlu0 %v249, 64
    %v253 = vpop.permute.xlu0 %252
    %v255 = vmul.f32 %v248, %v253
    %257 = vrot.lane.b32.xlu0 %v255, 32
    %v258 = vpop.permute.xlu0 %257
    %v260 = vadd.f32 %v250, %v258
    %v261 = vtanh.pop %v260
    %263 = vrot.lane.b32.xlu0 %v261, 64
    %v264 = vpop.permute.xlu0 %263
    %v266 = vmul.f32 %v248, %v264
    %v269 = vunpack.c.l.s4 1983009808
    %v270 = vunpack.c.0.s8 %v269
    %v271 = vlaneseq
    %v272 = vshrl.u32 %v271, 7
    %v273 = vsub.s32 %v270, %v272
    %v274 = vrot.slane %v266, %v273
    %275 = vrot.lane.b32.xlu0 %v274, 32
    %v276 = vpop.permute.xlu0 %275
    %vm277 = vcmask 261120
    %v278 = vsel %vm277, %v276, 0
    %280 = vmatprep.subr.mxu0 %v230
    %281 = vmatpush1.msra.mxu0 %v229
    %282 = vmatprep.subr.mxu0 %v232
    %283 = vmatpush1.msra.mxu0 %v231
    %284 = vmatprep.subr.mxu0 %v234
    %285 = vmatpush1.msra.mxu0 %v233
    %286 = vmatprep.subr.mxu0 %v236
    %287 = vmatpush1.msra.mxu0 %v235
    %288 = vmatprep.subr.mxu0 0.0
    %289 = vmatpush1.msra.mxu0 0.0
    %290 = vmatprep.subr.mxu0 0.0
    %291 = vmatpush1.msra.mxu0 0.0
    %292 = vmatprep.subr.mxu0 0.0
    %293 = vmatpush1.msra.mxu0 0.0
    %294 = vmatprep.subr.mxu0 0.0
    %295 = vmatpush1.msra.mxu0 0.0
    %296 = vmatprep.subr.mxu0 0.0
    %297 = vmatpush1.msra.mxu0 0.0
    %298 = vmatprep.subr.mxu0 0.0
    %299 = vmatpush1.msra.mxu0 0.0
    %300 = vmatprep.subr.mxu0 0.0
    %301 = vmatpush1.msra.mxu0 0.0
    %302 = vmatprep.subr.mxu0 0.0
    %303 = vmatpush1.msra.mxu0 0.0
    %304 = vmatprep.subr.mxu0 0.0
    %305 = vmatpush1.msra.mxu0 0.0
    %306 = vmatprep.subr.mxu0 0.0
    %307 = vmatpush1.msra.mxu0 0.0
    %308 = vmatprep.subr.mxu0 0.0
    %309 = vmatpush1.msra.mxu0 0.0
    %310 = vmatprep.subr.mxu0 0.0
    %311 = vmatpush1.msra.mxu0 0.0
    %312 = vmatprep.subr.mxu0 0.0
    %313 = vmatpush1.msra.mxu0 0.0
    %314 = vmatprep.subr.mxu0 0.0
    %315 = vmatpush1.msra.mxu0 0.0
    %316 = vmatprep.subr.mxu0 0.0
    %317 = vmatpush1.msra.mxu0 0.0
    %318 = vmatprep.subr.mxu0 0.0
    %319 = vmatpush1.msra.mxu0 0.0
    %320 = vmatprep.subr.mxu0 0.0
    %321 = vmatpush1.msra.mxu0 0.0
    %322 = vmatprep.subr.mxu0 0.0
    %323 = vmatpush1.msra.mxu0 0.0
    %324 = vmatprep.subr.mxu0 0.0
    %325 = vmatpush1.msra.mxu0 0.0
    %326 = vmatprep.subr.mxu0 0.0
    %327 = vmatpush1.msra.mxu0 0.0
    %328 = vmatprep.subr.mxu0 0.0
    %329 = vmatpush1.msra.mxu0 0.0
    %330 = vmatprep.subr.mxu0 0.0
    %331 = vmatpush1.msra.mxu0 0.0
    %332 = vmatprep.subr.mxu0 0.0
    %333 = vmatpush1.msra.mxu0 0.0
    %334 = vmatprep.subr.mxu0 0.0
    %335 = vmatpush1.msra.mxu0 0.0
    %336 = vmatprep.subr.mxu0 0.0
    %337 = vmatpush1.msra.mxu0 0.0
    %338 = vmatprep.subr.mxu0 0.0
    %339 = vmatpush1.msra.mxu0 0.0
    %340 = vmatprep.subr.mxu0 0.0
    %341 = vmatpush1.msra.mxu0 0.0
    %342 = vmatprep.subr.mxu0 0.0
    %343 = vmatpush1.msra.mxu0 0.0
    %344 = vmatprep.mubr.f32.mxu0 0.0
    %345 = vmatmul.mubr.f32.gmra.mrb[0].mxu0 %v278
    %v346 = vpop.f32.mrb[0].mxu0
    %v347 = vadd.f32 0.0, %v346
    %v348 = vpop.f32.mrb[0].mxu0
    %v349 = vadd.f32 0.0, %v348
    %350 = vdwg.mxu0
    %v352 = vsel %vm277, 0.0, 0
    %354 = vmatprep.subr.mxu0 0.0
    %355 = vmatpush1.msra.mxu0 %v237
    %356 = vmatprep.subr.mxu0 0.0
    %357 = vmatpush1.msra.mxu0 %v238
    %358 = vmatprep.subr.mxu0 0.0
    %359 = vmatpush1.msra.mxu0 %v239
    %360 = vmatprep.subr.mxu0 0.0
    %361 = vmatpush1.msra.mxu0 %v240
    %362 = vmatprep.subr.mxu0 0.0
    %363 = vmatpush1.msra.mxu0 0.0
    %364 = vmatprep.subr.mxu0 0.0
    %365 = vmatpush1.msra.mxu0 0.0
    %366 = vmatprep.subr.mxu0 0.0
    %367 = vmatpush1.msra.mxu0 0.0
    %368 = vmatprep.subr.mxu0 0.0
    %369 = vmatpush1.msra.mxu0 0.0
    %370 = vmatprep.subr.mxu0 0.0
    %371 = vmatpush1.msra.mxu0 0.0
    %372 = vmatprep.subr.mxu0 0.0
    %373 = vmatpush1.msra.mxu0 0.0
    %374 = vmatprep.subr.mxu0 0.0
    %375 = vmatpush1.msra.mxu0 0.0
    %376 = vmatprep.subr.mxu0 0.0
    %377 = vmatpush1.msra.mxu0 0.0
    %378 = vmatprep.subr.mxu0 0.0
    %379 = vmatpush1.msra.mxu0 0.0
    %380 = vmatprep.subr.mxu0 0.0
    %381 = vmatpush1.msra.mxu0 0.0
    %382 = vmatprep.subr.mxu0 0.0
    %383 = vmatpush1.msra.mxu0 0.0
    %384 = vmatprep.subr.mxu0 0.0
    %385 = vmatpush1.msra.mxu0 0.0
    %386 = vmatprep.subr.mxu0 0.0
    %387 = vmatpush1.msra.mxu0 0.0
    %388 = vmatprep.subr.mxu0 0.0
    %389 = vmatpush1.msra.mxu0 0.0
    %390 = vmatprep.subr.mxu0 0.0
    %391 = vmatpush1.msra.mxu0 0.0
    %392 = vmatprep.subr.mxu0 0.0
    %393 = vmatpush1.msra.mxu0 0.0
    %394 = vmatprep.subr.mxu0 0.0
    %395 = vmatpush1.msra.mxu0 0.0
    %396 = vmatprep.subr.mxu0 0.0
    %397 = vmatpush1.msra.mxu0 0.0
    %398 = vmatprep.subr.mxu0 0.0
    %399 = vmatpush1.msra.mxu0 0.0
    %400 = vmatprep.subr.mxu0 0.0
    %401 = vmatpush1.msra.mxu0 0.0
    %402 = vmatprep.subr.mxu0 0.0
    %403 = vmatpush1.msra.mxu0 0.0
    %404 = vmatprep.subr.mxu0 0.0
    %405 = vmatpush1.msra.mxu0 0.0
    %406 = vmatprep.subr.mxu0 0.0
    %407 = vmatpush1.msra.mxu0 0.0
    %408 = vmatprep.subr.mxu0 0.0
    %409 = vmatpush1.msra.mxu0 0.0
    %410 = vmatprep.subr.mxu0 0.0
    %411 = vmatpush1.msra.mxu0 0.0
    %412 = vmatprep.subr.mxu0 0.0
    %413 = vmatpush1.msra.mxu0 0.0
    %414 = vmatprep.subr.mxu0 0.0
    %415 = vmatpush1.msra.mxu0 0.0
    %416 = vmatprep.subr.mxu0 0.0
    %417 = vmatpush1.msra.mxu0 0.0
    %418 = vmatprep.mubr.f32.mxu0 0.0
    %419 = vmatmul.mubr.f32.gmra.mrb[0].mxu0 %v352
    %v420 = vpop.f32.mrb[0].mxu0
    %v421 = vadd.f32 0.0, %v420
    %v422 = vpop.f32.mrb[0].mxu0
    %423 = vdwg.mxu0
    %v424 = vadd.f32 %v349, %v421
    %v426 = vlaneseq
    %v427 = vshrl.u32 %v426, 7
    %v428 = vsub.s32 0, %v427
    %v429 = vrot.slane %v241, %v428
    %v431 = vadd.f32 %v424, %v429
    %v432 = vxor.u32 %v431, 2147483648
    %v433 = vmul.f32 %v432, 1.442695
    %v434 = vpow.pop %v433
    %v435 = vadd.f32 %v434, 1.0
    %v436 = vrcp.pop %v435
    %v437 = vmul.f32 1.0, %v436
    %v438 = vtanh.pop %v431
    %v439 = vmul.f32 %v437, 0.0
    %441 = vrot.lane.b32.xlu0 %v438, 64
    %v442 = vpop.permute.xlu0 %441
    %v444 = vmul.f32 %v437, %v442
    %446 = vrot.lane.b32.xlu0 %v444, 32
    %v447 = vpop.permute.xlu0 %446
    %v449 = vadd.f32 %v439, %v447
    %v450 = vtanh.pop %v449
    %452 = vrot.lane.b32.xlu0 %v450, 64
    %v453 = vpop.permute.xlu0 %452
    %v455 = vmul.f32 %v437, %v453
    %v456 = vadd.f32 %v202, %v347
    %v457 = vxor.u32 %v456, 2147483648
    %v458 = vmul.f32 %v457, 1.442695
    %v459 = vpow.pop %v458
    %v460 = vadd.f32 %v459, 1.0
    %v461 = vrcp.pop %v460
    %v462 = vmul.f32 1.0, %v461
    %v463 = vtanh.pop %v456
    %v464 = vmul.f32 %v462, %v260
    %466 = vrot.lane.b32.xlu0 %v463, 64
    %v467 = vpop.permute.xlu0 %466
    %v469 = vmul.f32 %v462, %v467
    %471 = vrot.lane.b32.xlu0 %v469, 32
    %v472 = vpop.permute.xlu0 %471
    %v474 = vadd.f32 %v464, %v472
    %v475 = vtanh.pop %v474
    %477 = vrot.lane.b32.xlu0 %v475, 64
    %v478 = vpop.permute.xlu0 %477
    %v480 = vmul.f32 %v462, %v478
    %v483 = vunpack.c.l.s4 1983009808
    %v484 = vunpack.c.0.s8 %v483
    %v485 = vlaneseq
    %v486 = vshrl.u32 %v485, 7
    %v487 = vsub.s32 %v484, %v486
    %v488 = vrot.slane %v480, %v487
    %489 = vrot.lane.b32.xlu0 %v488, 32
    %v490 = vpop.permute.xlu0 %489
    %v491 = vsel %vm277, %v490, 0
    %493 = vmatprep.subr.mxu0 %v230
    %494 = vmatpush1.msra.mxu0 %v229
    %495 = vmatprep.subr.mxu0 %v232
    %496 = vmatpush1.msra.mxu0 %v231
    %497 = vmatprep.subr.mxu0 %v234
    %498 = vmatpush1.msra.mxu0 %v233
    %499 = vmatprep.subr.mxu0 %v236
    %500 = vmatpush1.msra.mxu0 %v235
    %501 = vmatprep.subr.mxu0 0.0
    %502 = vmatpush1.msra.mxu0 0.0
    %503 = vmatprep.subr.mxu0 0.0
    %504 = vmatpush1.msra.mxu0 0.0
    %505 = vmatprep.subr.mxu0 0.0
    %506 = vmatpush1.msra.mxu0 0.0
    %507 = vmatprep.subr.mxu0 0.0
    %508 = vmatpush1.msra.mxu0 0.0
    %509 = vmatprep.subr.mxu0 0.0
    %510 = vmatpush1.msra.mxu0 0.0
    %511 = vmatprep.subr.mxu0 0.0
    %512 = vmatpush1.msra.mxu0 0.0
    %513 = vmatprep.subr.mxu0 0.0
    %514 = vmatpush1.msra.mxu0 0.0
    %515 = vmatprep.subr.mxu0 0.0
    %516 = vmatpush1.msra.mxu0 0.0
    %517 = vmatprep.subr.mxu0 0.0
    %518 = vmatpush1.msra.mxu0 0.0
    %519 = vmatprep.subr.mxu0 0.0
    %520 = vmatpush1.msra.mxu0 0.0
    %521 = vmatprep.subr.mxu0 0.0
    %522 = vmatpush1.msra.mxu0 0.0
    %523 = vmatprep.subr.mxu0 0.0
    %524 = vmatpush1.msra.mxu0 0.0
    %525 = vmatprep.subr.mxu0 0.0
    %526 = vmatpush1.msra.mxu0 0.0
    %527 = vmatprep.subr.mxu0 0.0
    %528 = vmatpush1.msra.mxu0 0.0
    %529 = vmatprep.subr.mxu0 0.0
    %530 = vmatpush1.msra.mxu0 0.0
    %531 = vmatprep.subr.mxu0 0.0
    %532 = vmatpush1.msra.mxu0 0.0
    %533 = vmatprep.subr.mxu0 0.0
    %534 = vmatpush1.msra.mxu0 0.0
    %535 = vmatprep.subr.mxu0 0.0
    %536 = vmatpush1.msra.mxu0 0.0
    %537 = vmatprep.subr.mxu0 0.0
    %538 = vmatpush1.msra.mxu0 0.0
    %539 = vmatprep.subr.mxu0 0.0
    %540 = vmatpush1.msra.mxu0 0.0
    %541 = vmatprep.subr.mxu0 0.0
    %542 = vmatpush1.msra.mxu0 0.0
    %543 = vmatprep.subr.mxu0 0.0
    %544 = vmatpush1.msra.mxu0 0.0
    %545 = vmatprep.subr.mxu0 0.0
    %546 = vmatpush1.msra.mxu0 0.0
    %547 = vmatprep.subr.mxu0 0.0
    %548 = vmatpush1.msra.mxu0 0.0
    %549 = vmatprep.subr.mxu0 0.0
    %550 = vmatpush1.msra.mxu0 0.0
    %551 = vmatprep.subr.mxu0 0.0
    %552 = vmatpush1.msra.mxu0 0.0
    %553 = vmatprep.subr.mxu0 0.0
    %554 = vmatpush1.msra.mxu0 0.0
    %555 = vmatprep.subr.mxu0 0.0
    %556 = vmatpush1.msra.mxu0 0.0
    %557 = vmatprep.mubr.f32.mxu0 0.0
    %558 = vmatmul.mubr.f32.gmra.mrb[0].mxu0 %v491
    %v559 = vpop.f32.mrb[0].mxu0
    %v560 = vadd.f32 0.0, %v559
    %v561 = vpop.f32.mrb[0].mxu0
    %v562 = vadd.f32 0.0, %v561
    %563 = vdwg.mxu0
    %565 = vrot.lane.b32.xlu0 %v455, 32
    %v566 = vpop.permute.xlu0 %565
    %v567 = vsel %vm277, %v566, 0
    %569 = vmatprep.subr.mxu0 0.0
    %570 = vmatpush1.msra.mxu0 %v237
    %571 = vmatprep.subr.mxu0 0.0
    %572 = vmatpush1.msra.mxu0 %v238
    %573 = vmatprep.subr.mxu0 0.0
    %574 = vmatpush1.msra.mxu0 %v239
    %575 = vmatprep.subr.mxu0 0.0
    %576 = vmatpush1.msra.mxu0 %v240
    %577 = vmatprep.subr.mxu0 0.0
    %578 = vmatpush1.msra.mxu0 0.0
    %579 = vmatprep.subr.mxu0 0.0
    %580 = vmatpush1.msra.mxu0 0.0
    %581 = vmatprep.subr.mxu0 0.0
    %582 = vmatpush1.msra.mxu0 0.0
    %583 = vmatprep.subr.mxu0 0.0
    %584 = vmatpush1.msra.mxu0 0.0
    %585 = vmatprep.subr.mxu0 0.0
    %586 = vmatpush1.msra.mxu0 0.0
    %587 = vmatprep.subr.mxu0 0.0
    %588 = vmatpush1.msra.mxu0 0.0
    %589 = vmatprep.subr.mxu0 0.0
    %590 = vmatpush1.msra.mxu0 0.0
    %591 = vmatprep.subr.mxu0 0.0
    %592 = vmatpush1.msra.mxu0 0.0
    %593 = vmatprep.subr.mxu0 0.0
    %594 = vmatpush1.msra.mxu0 0.0
    %595 = vmatprep.subr.mxu0 0.0
    %596 = vmatpush1.msra.mxu0 0.0
    %597 = vmatprep.subr.mxu0 0.0
    %598 = vmatpush1.msra.mxu0 0.0
    %599 = vmatprep.subr.mxu0 0.0
    %600 = vmatpush1.msra.mxu0 0.0
    %601 = vmatprep.subr.mxu0 0.0
    %602 = vmatpush1.msra.mxu0 0.0
    %603 = vmatprep.subr.mxu0 0.0
    %604 = vmatpush1.msra.mxu0 0.0
    %605 = vmatprep.subr.mxu0 0.0
    %606 = vmatpush1.msra.mxu0 0.0
    %607 = vmatprep.subr.mxu0 0.0
    %608 = vmatpush1.msra.mxu0 0.0
    %609 = vmatprep.subr.mxu0 0.0
    %610 = vmatpush1.msra.mxu0 0.0
    %611 = vmatprep.subr.mxu0 0.0
    %612 = vmatpush1.msra.mxu0 0.0
    %613 = vmatprep.subr.mxu0 0.0
    %614 = vmatpush1.msra.mxu0 0.0
    %615 = vmatprep.subr.mxu0 0.0
    %616 = vmatpush1.msra.mxu0 0.0
    %617 = vmatprep.subr.mxu0 0.0
    %618 = vmatpush1.msra.mxu0 0.0
    %619 = vmatprep.subr.mxu0 0.0
    %620 = vmatpush1.msra.mxu0 0.0
    %621 = vmatprep.subr.mxu0 0.0
    %622 = vmatpush1.msra.mxu0 0.0
    %623 = vmatprep.subr.mxu0 0.0
    %624 = vmatpush1.msra.mxu0 0.0
    %625 = vmatprep.subr.mxu0 0.0
    %626 = vmatpush1.msra.mxu0 0.0
    %627 = vmatprep.subr.mxu0 0.0
    %628 = vmatpush1.msra.mxu0 0.0
    %629 = vmatprep.subr.mxu0 0.0
    %630 = vmatpush1.msra.mxu0 0.0
    %631 = vmatprep.subr.mxu0 0.0
    %632 = vmatpush1.msra.mxu0 0.0
    %633 = vmatprep.mubr.f32.mxu0 0.0
    %634 = vmatmul.mubr.f32.gmra.mrb[0].mxu0 %v567
    %v635 = vpop.f32.mrb[0].mxu0
    %v636 = vadd.f32 0.0, %v635
    %v637 = vpop.f32.mrb[0].mxu0
    %638 = vdwg.mxu0
    %v639 = vadd.f32 %v562, %v636
    %v640 = vadd.f32 %v639, %v429
    %v641 = vxor.u32 %v640, 2147483648
    %v642 = vmul.f32 %v641, 1.442695
    %v643 = vpow.pop %v642
    %v644 = vadd.f32 %v643, 1.0
    %v645 = vrcp.pop %v644
    %v646 = vmul.f32 1.0, %v645
    %v647 = vtanh.pop %v640
    %v648 = vmul.f32 %v646, %v449
    %650 = vrot.lane.b32.xlu0 %v647, 64
    %v651 = vpop.permute.xlu0 %650
    %v653 = vmul.f32 %v646, %v651
    %655 = vrot.lane.b32.xlu0 %v653, 32
    %v656 = vpop.permute.xlu0 %655
    %v658 = vadd.f32 %v648, %v656
    %v659 = vtanh.pop %v658
    %661 = vrot.lane.b32.xlu0 %v659, 64
    %v662 = vpop.permute.xlu0 %661
    %v664 = vmul.f32 %v646, %v662
    %v665 = vadd.f32 %v201, %v560
    %v666 = vxor.u32 %v665, 2147483648
    %v667 = vmul.f32 %v666, 1.442695
    %v668 = vpow.pop %v667
    %v669 = vadd.f32 %v668, 1.0
    %v670 = vrcp.pop %v669
    %v671 = vmul.f32 1.0, %v670
    %v672 = vtanh.pop %v665
    %v673 = vmul.f32 %v671, %v474
    %675 = vrot.lane.b32.xlu0 %v672, 64
    %v676 = vpop.permute.xlu0 %675
    %v678 = vmul.f32 %v671, %v676
    %680 = vrot.lane.b32.xlu0 %v678, 32
    %v681 = vpop.permute.xlu0 %680
    %v683 = vadd.f32 %v673, %v681
    %v684 = vtanh.pop %v683
    %686 = vrot.lane.b32.xlu0 %v684, 64
    %v687 = vpop.permute.xlu0 %686
    %v689 = vmul.f32 %v671, %v687
    %v692 = vunpack.c.l.s4 1983009808
    %v693 = vunpack.c.0.s8 %v692
    %v694 = vlaneseq
    %v695 = vshrl.u32 %v694, 7
    %v696 = vsub.s32 %v693, %v695
    %v697 = vrot.slane %v689, %v696
    %698 = vrot.lane.b32.xlu0 %v697, 32
    %v699 = vpop.permute.xlu0 %698
    %v700 = vsel %vm277, %v699, 0
    %702 = vmatprep.subr.mxu0 %v230
    %703 = vmatpush1.msra.mxu0 %v229
    %704 = vmatprep.subr.mxu0 %v232
    %705 = vmatpush1.msra.mxu0 %v231
    %706 = vmatprep.subr.mxu0 %v234
    %707 = vmatpush1.msra.mxu0 %v233
    %708 = vmatprep.subr.mxu0 %v236
    %709 = vmatpush1.msra.mxu0 %v235
    %710 = vmatprep.subr.mxu0 0.0
    %711 = vmatpush1.msra.mxu0 0.0
    %712 = vmatprep.subr.mxu0 0.0
    %713 = vmatpush1.msra.mxu0 0.0
    %714 = vmatprep.subr.mxu0 0.0
    %715 = vmatpush1.msra.mxu0 0.0
    %716 = vmatprep.subr.mxu0 0.0
    %717 = vmatpush1.msra.mxu0 0.0
    %718 = vmatprep.subr.mxu0 0.0
    %719 = vmatpush1.msra.mxu0 0.0
    %720 = vmatprep.subr.mxu0 0.0
    %721 = vmatpush1.msra.mxu0 0.0
    %722 = vmatprep.subr.mxu0 0.0
    %723 = vmatpush1.msra.mxu0 0.0
    %724 = vmatprep.subr.mxu0 0.0
    %725 = vmatpush1.msra.mxu0 0.0
    %726 = vmatprep.subr.mxu0 0.0
    %727 = vmatpush1.msra.mxu0 0.0
    %728 = vmatprep.subr.mxu0 0.0
    %729 = vmatpush1.msra.mxu0 0.0
    %730 = vmatprep.subr.mxu0 0.0
    %731 = vmatpush1.msra.mxu0 0.0
    %732 = vmatprep.subr.mxu0 0.0
    %733 = vmatpush1.msra.mxu0 0.0
    %734 = vmatprep.subr.mxu0 0.0
    %735 = vmatpush1.msra.mxu0 0.0
    %736 = vmatprep.subr.mxu0 0.0
    %737 = vmatpush1.msra.mxu0 0.0
    %738 = vmatprep.subr.mxu0 0.0
    %739 = vmatpush1.msra.mxu0 0.0
    %740 = vmatprep.subr.mxu0 0.0
    %741 = vmatpush1.msra.mxu0 0.0
    %742 = vmatprep.subr.mxu0 0.0
    %743 = vmatpush1.msra.mxu0 0.0
    %744 = vmatprep.subr.mxu0 0.0
    %745 = vmatpush1.msra.mxu0 0.0
    %746 = vmatprep.subr.mxu0 0.0
    %747 = vmatpush1.msra.mxu0 0.0
    %748 = vmatprep.subr.mxu0 0.0
    %749 = vmatpush1.msra.mxu0 0.0
    %750 = vmatprep.subr.mxu0 0.0
    %751 = vmatpush1.msra.mxu0 0.0
    %752 = vmatprep.subr.mxu0 0.0
    %753 = vmatpush1.msra.mxu0 0.0
    %754 = vmatprep.subr.mxu0 0.0
    %755 = vmatpush1.msra.mxu0 0.0
    %756 = vmatprep.subr.mxu0 0.0
    %757 = vmatpush1.msra.mxu0 0.0
    %758 = vmatprep.subr.mxu0 0.0
    %759 = vmatpush1.msra.mxu0 0.0
    %760 = vmatprep.subr.mxu0 0.0
    %761 = vmatpush1.msra.mxu0 0.0
    %762 = vmatprep.subr.mxu0 0.0
    %763 = vmatpush1.msra.mxu0 0.0
    %764 = vmatprep.subr.mxu0 0.0
    %765 = vmatpush1.msra.mxu0 0.0
    %766 = vmatprep.mubr.f32.mxu0 0.0
    %767 = vmatmul.mubr.f32.gmra.mrb[0].mxu0 %v700
    %v768 = vpop.f32.mrb[0].mxu0
    %v769 = vadd.f32 0.0, %v768
    %v770 = vpop.f32.mrb[0].mxu0
    %v771 = vadd.f32 0.0, %v770
    %772 = vdwg.mxu0
    %774 = vrot.lane.b32.xlu0 %v664, 32
    %v775 = vpop.permute.xlu0 %774
    %v776 = vsel %vm277, %v775, 0
    %778 = vmatprep.subr.mxu0 0.0
    %779 = vmatpush1.msra.mxu0 %v237
    %780 = vmatprep.subr.mxu0 0.0
    %781 = vmatpush1.msra.mxu0 %v238
    %782 = vmatprep.subr.mxu0 0.0
    %783 = vmatpush1.msra.mxu0 %v239
    %784 = vmatprep.subr.mxu0 0.0
    %785 = vmatpush1.msra.mxu0 %v240
    %786 = vmatprep.subr.mxu0 0.0
    %787 = vmatpush1.msra.mxu0 0.0
    %788 = vmatprep.subr.mxu0 0.0
    %789 = vmatpush1.msra.mxu0 0.0
    %790 = vmatprep.subr.mxu0 0.0
    %791 = vmatpush1.msra.mxu0 0.0
    %792 = vmatprep.subr.mxu0 0.0
    %793 = vmatpush1.msra.mxu0 0.0
    %794 = vmatprep.subr.mxu0 0.0
    %795 = vmatpush1.msra.mxu0 0.0
    %796 = vmatprep.subr.mxu0 0.0
    %797 = vmatpush1.msra.mxu0 0.0
    %798 = vmatprep.subr.mxu0 0.0
    %799 = vmatpush1.msra.mxu0 0.0
    %800 = vmatprep.subr.mxu0 0.0
    %801 = vmatpush1.msra.mxu0 0.0
    %802 = vmatprep.subr.mxu0 0.0
    %803 = vmatpush1.msra.mxu0 0.0
    %804 = vmatprep.subr.mxu0 0.0
    %805 = vmatpush1.msra.mxu0 0.0
    %806 = vmatprep.subr.mxu0 0.0
    %807 = vmatpush1.msra.mxu0 0.0
    %808 = vmatprep.subr.mxu0 0.0
    %809 = vmatpush1.msra.mxu0 0.0
    %810 = vmatprep.subr.mxu0 0.0
    %811 = vmatpush1.msra.mxu0 0.0
    %812 = vmatprep.subr.mxu0 0.0
    %813 = vmatpush1.msra.mxu0 0.0
    %814 = vmatprep.subr.mxu0 0.0
    %815 = vmatpush1.msra.mxu0 0.0
    %816 = vmatprep.subr.mxu0 0.0
    %817 = vmatpush1.msra.mxu0 0.0
    %818 = vmatprep.subr.mxu0 0.0
    %819 = vmatpush1.msra.mxu0 0.0
    %820 = vmatprep.subr.mxu0 0.0
    %821 = vmatpush1.msra.mxu0 0.0
    %822 = vmatprep.subr.mxu0 0.0
    %823 = vmatpush1.msra.mxu0 0.0
    %824 = vmatprep.subr.mxu0 0.0
    %825 = vmatpush1.msra.mxu0 0.0
    %826 = vmatprep.subr.mxu0 0.0
    %827 = vmatpush1.msra.mxu0 0.0
    %828 = vmatprep.subr.mxu0 0.0
    %829 = vmatpush1.msra.mxu0 0.0
    %830 = vmatprep.subr.mxu0 0.0
    %831 = vmatpush1.msra.mxu0 0.0
    %832 = vmatprep.subr.mxu0 0.0
    %833 = vmatpush1.msra.mxu0 0.0
    %834 = vmatprep.subr.mxu0 0.0
    %835 = vmatpush1.msra.mxu0 0.0
    %836 = vmatprep.subr.mxu0 0.0
    %837 = vmatpush1.msra.mxu0 0.0
    %838 = vmatprep.subr.mxu0 0.0
    %839 = vmatpush1.msra.mxu0 0.0
    %840 = vmatprep.subr.mxu0 0.0
    %841 = vmatpush1.msra.mxu0 0.0
    %842 = vmatprep.mubr.f32.mxu0 0.0
    %843 = vmatmul.mubr.f32.gmra.mrb[0].mxu0 %v776
    %v844 = vpop.f32.mrb[0].mxu0
    %v845 = vadd.f32 0.0, %v844
    %v846 = vpop.f32.mrb[0].mxu0
    %847 = vdwg.mxu0
    %v848 = vadd.f32 %v771, %v845
    %v849 = vadd.f32 %v848, %v429
    %v850 = vxor.u32 %v849, 2147483648
    %v851 = vmul.f32 %v850, 1.442695
    %v852 = vpow.pop %v851
    %v853 = vadd.f32 %v852, 1.0
    %v854 = vrcp.pop %v853
    %v855 = vmul.f32 1.0, %v854
    %v856 = vtanh.pop %v849
    %v857 = vmul.f32 %v855, %v658
    %859 = vrot.lane.b32.xlu0 %v856, 64
    %v860 = vpop.permute.xlu0 %859
    %v862 = vmul.f32 %v855, %v860
    %864 = vrot.lane.b32.xlu0 %v862, 32
    %v865 = vpop.permute.xlu0 %864
    %v867 = vadd.f32 %v857, %v865
    %v868 = vtanh.pop %v867
    %870 = vrot.lane.b32.xlu0 %v868, 64
    %v871 = vpop.permute.xlu0 %870
    %v873 = vmul.f32 %v855, %v871
    %v874 = vadd.f32 %v203, %v769
    %v875 = vxor.u32 %v874, 2147483648
    %v876 = vmul.f32 %v875, 1.442695
    %v877 = vpow.pop %v876
    %v878 = vadd.f32 %v877, 1.0
    %v879 = vrcp.pop %v878
    %v880 = vmul.f32 1.0, %v879
    %v881 = vtanh.pop %v874
    %v882 = vmul.f32 %v880, %v683
    %884 = vrot.lane.b32.xlu0 %v881, 64
    %v885 = vpop.permute.xlu0 %884
    %v887 = vmul.f32 %v880, %v885
    %889 = vrot.lane.b32.xlu0 %v887, 32
    %v890 = vpop.permute.xlu0 %889
    %v892 = vadd.f32 %v882, %v890
    %v893 = vtanh.pop %v892
    %895 = vrot.lane.b32.xlu0 %v893, 64
    %v896 = vpop.permute.xlu0 %895
    %v898 = vmul.f32 %v880, %v896
    %v901 = vunpack.c.l.s4 1983009808
    %v902 = vunpack.c.0.s8 %v901
    %v903 = vlaneseq
    %v904 = vshrl.u32 %v903, 7
    %v905 = vsub.s32 %v902, %v904
    %v906 = vrot.slane %v898, %v905
    %907 = vrot.lane.b32.xlu0 %v906, 32
    %v908 = vpop.permute.xlu0 %907
    %v909 = vsel %vm277, %v908, 0
    %911 = vmatprep.subr.mxu0 %v230
    %912 = vmatpush1.msra.mxu0 %v229
    %913 = vmatprep.subr.mxu0 %v232
    %914 = vmatpush1.msra.mxu0 %v231
    %915 = vmatprep.subr.mxu0 %v234
    %916 = vmatpush1.msra.mxu0 %v233
    %917 = vmatprep.subr.mxu0 %v236
    %918 = vmatpush1.msra.mxu0 %v235
    %919 = vmatprep.subr.mxu0 0.0
    %920 = vmatpush1.msra.mxu0 0.0
    %921 = vmatprep.subr.mxu0 0.0
    %922 = vmatpush1.msra.mxu0 0.0
    %923 = vmatprep.subr.mxu0 0.0
    %924 = vmatpush1.msra.mxu0 0.0
    %925 = vmatprep.subr.mxu0 0.0
    %926 = vmatpush1.msra.mxu0 0.0
    %927 = vmatprep.subr.mxu0 0.0
    %928 = vmatpush1.msra.mxu0 0.0
    %929 = vmatprep.subr.mxu0 0.0
    %930 = vmatpush1.msra.mxu0 0.0
    %931 = vmatprep.subr.mxu0 0.0
    %932 = vmatpush1.msra.mxu0 0.0
    %933 = vmatprep.subr.mxu0 0.0
    %934 = vmatpush1.msra.mxu0 0.0
    %935 = vmatprep.subr.mxu0 0.0
    %936 = vmatpush1.msra.mxu0 0.0
    %937 = vmatprep.subr.mxu0 0.0
    %938 = vmatpush1.msra.mxu0 0.0
    %939 = vmatprep.subr.mxu0 0.0
    %940 = vmatpush1.msra.mxu0 0.0
    %941 = vmatprep.subr.mxu0 0.0
    %942 = vmatpush1.msra.mxu0 0.0
    %943 = vmatprep.subr.mxu0 0.0
    %944 = vmatpush1.msra.mxu0 0.0
    %945 = vmatprep.subr.mxu0 0.0
    %946 = vmatpush1.msra.mxu0 0.0
    %947 = vmatprep.subr.mxu0 0.0
    %948 = vmatpush1.msra.mxu0 0.0
    %949 = vmatprep.subr.mxu0 0.0
    %950 = vmatpush1.msra.mxu0 0.0
    %951 = vmatprep.subr.mxu0 0.0
    %952 = vmatpush1.msra.mxu0 0.0
    %953 = vmatprep.subr.mxu0 0.0
    %954 = vmatpush1.msra.mxu0 0.0
    %955 = vmatprep.subr.mxu0 0.0
    %956 = vmatpush1.msra.mxu0 0.0
    %957 = vmatprep.subr.mxu0 0.0
    %958 = vmatpush1.msra.mxu0 0.0
    %959 = vmatprep.subr.mxu0 0.0
    %960 = vmatpush1.msra.mxu0 0.0
    %961 = vmatprep.subr.mxu0 0.0
    %962 = vmatpush1.msra.mxu0 0.0
    %963 = vmatprep.subr.mxu0 0.0
    %964 = vmatpush1.msra.mxu0 0.0
    %965 = vmatprep.subr.mxu0 0.0
    %966 = vmatpush1.msra.mxu0 0.0
    %967 = vmatprep.subr.mxu0 0.0
    %968 = vmatpush1.msra.mxu0 0.0
    %969 = vmatprep.subr.mxu0 0.0
    %970 = vmatpush1.msra.mxu0 0.0
    %971 = vmatprep.subr.mxu0 0.0
    %972 = vmatpush1.msra.mxu0 0.0
    %973 = vmatprep.subr.mxu0 0.0
    %974 = vmatpush1.msra.mxu0 0.0
    %975 = vmatprep.mubr.f32.mxu0 0.0
    %976 = vmatmul.mubr.f32.gmra.mrb[0].mxu0 %v909
    %v977 = vpop.f32.mrb[0].mxu0
    %v978 = vadd.f32 0.0, %v977
    %v979 = vpop.f32.mrb[0].mxu0
    %v980 = vadd.f32 0.0, %v979
    %981 = vdwg.mxu0
    %983 = vrot.lane.b32.xlu0 %v873, 32
    %v984 = vpop.permute.xlu0 %983
    %v985 = vsel %vm277, %v984, 0
    %987 = vmatprep.subr.mxu0 0.0
    %988 = vmatpush1.msra.mxu0 %v237
    %989 = vmatprep.subr.mxu0 0.0
    %990 = vmatpush1.msra.mxu0 %v238
    %991 = vmatprep.subr.mxu0 0.0
    %992 = vmatpush1.msra.mxu0 %v239
    %993 = vmatprep.subr.mxu0 0.0
    %994 = vmatpush1.msra.mxu0 %v240
    %995 = vmatprep.subr.mxu0 0.0
    %996 = vmatpush1.msra.mxu0 0.0
    %997 = vmatprep.subr.mxu0 0.0
    %998 = vmatpush1.msra.mxu0 0.0
    %999 = vmatprep.subr.mxu0 0.0
    %1000 = vmatpush1.msra.mxu0 0.0
    %1001 = vmatprep.subr.mxu0 0.0
    %1002 = vmatpush1.msra.mxu0 0.0
    %1003 = vmatprep.subr.mxu0 0.0
    %1004 = vmatpush1.msra.mxu0 0.0
    %1005 = vmatprep.subr.mxu0 0.0
    %1006 = vmatpush1.msra.mxu0 0.0
    %1007 = vmatprep.subr.mxu0 0.0
    %1008 = vmatpush1.msra.mxu0 0.0
    %1009 = vmatprep.subr.mxu0 0.0
    %1010 = vmatpush1.msra.mxu0 0.0
    %1011 = vmatprep.subr.mxu0 0.0
    %1012 = vmatpush1.msra.mxu0 0.0
    %1013 = vmatprep.subr.mxu0 0.0
    %1014 = vmatpush1.msra.mxu0 0.0
    %1015 = vmatprep.subr.mxu0 0.0
    %1016 = vmatpush1.msra.mxu0 0.0
    %1017 = vmatprep.subr.mxu0 0.0
    %1018 = vmatpush1.msra.mxu0 0.0
    %1019 = vmatprep.subr.mxu0 0.0
    %1020 = vmatpush1.msra.mxu0 0.0
    %1021 = vmatprep.subr.mxu0 0.0
    %1022 = vmatpush1.msra.mxu0 0.0
    %1023 = vmatprep.subr.mxu0 0.0
    %1024 = vmatpush1.msra.mxu0 0.0
    %1025 = vmatprep.subr.mxu0 0.0
    %1026 = vmatpush1.msra.mxu0 0.0
    %1027 = vmatprep.subr.mxu0 0.0
    %1028 = vmatpush1.msra.mxu0 0.0
    %1029 = vmatprep.subr.mxu0 0.0
    %1030 = vmatpush1.msra.mxu0 0.0
    %1031 = vmatprep.subr.mxu0 0.0
    %1032 = vmatpush1.msra.mxu0 0.0
    %1033 = vmatprep.subr.mxu0 0.0
    %1034 = vmatpush1.msra.mxu0 0.0
    %1035 = vmatprep.subr.mxu0 0.0
    %1036 = vmatpush1.msra.mxu0 0.0
    %1037 = vmatprep.subr.mxu0 0.0
    %1038 = vmatpush1.msra.mxu0 0.0
    %1039 = vmatprep.subr.mxu0 0.0
    %1040 = vmatpush1.msra.mxu0 0.0
    %1041 = vmatprep.subr.mxu0 0.0
    %1042 = vmatpush1.msra.mxu0 0.0
    %1043 = vmatprep.subr.mxu0 0.0
    %1044 = vmatpush1.msra.mxu0 0.0
    %1045 = vmatprep.subr.mxu0 0.0
    %1046 = vmatpush1.msra.mxu0 0.0
    %1047 = vmatprep.subr.mxu0 0.0
    %1048 = vmatpush1.msra.mxu0 0.0
    %1049 = vmatprep.subr.mxu0 0.0
    %1050 = vmatpush1.msra.mxu0 0.0
    %1051 = vmatprep.mubr.f32.mxu0 0.0
    %1052 = vmatmul.mubr.f32.gmra.mrb[0].mxu0 %v985
    %v1053 = vpop.f32.mrb[0].mxu0
    %v1054 = vadd.f32 0.0, %v1053
    %v1055 = vpop.f32.mrb[0].mxu0
    %1056 = vdwg.mxu0
    %v1057 = vadd.f32 %v980, %v1054
    %v1058 = vadd.f32 %v1057, %v429
    %v1059 = vxor.u32 %v1058, 2147483648
    %v1060 = vmul.f32 %v1059, 1.442695
    %v1061 = vpow.pop %v1060
    %v1062 = vadd.f32 %v1061, 1.0
    %v1063 = vrcp.pop %v1062
    %v1064 = vmul.f32 1.0, %v1063
    %v1065 = vtanh.pop %v1058
    %v1066 = vmul.f32 %v1064, %v867
    %1068 = vrot.lane.b32.xlu0 %v1065, 64
    %v1069 = vpop.permute.xlu0 %1068
    %v1071 = vmul.f32 %v1064, %v1069
    %1073 = vrot.lane.b32.xlu0 %v1071, 32
    %v1074 = vpop.permute.xlu0 %1073
    %v1076 = vadd.f32 %v1066, %v1074
    %v1077 = vtanh.pop %v1076
    %1079 = vrot.lane.b32.xlu0 %v1077, 64
    %v1080 = vpop.permute.xlu0 %1079
    %v1082 = vmul.f32 %v1064, %v1080
    %v1083 = vadd.f32 %v211, %v978
    %v1084 = vxor.u32 %v1083, 2147483648
    %v1085 = vmul.f32 %v1084, 1.442695
    %v1086 = vpow.pop %v1085
    %v1087 = vadd.f32 %v1086, 1.0
    %v1088 = vrcp.pop %v1087
    %v1089 = vmul.f32 1.0, %v1088
    %v1090 = vtanh.pop %v1083
    %v1091 = vmul.f32 %v1089, %v892
    %1093 = vrot.lane.b32.xlu0 %v1090, 64
    %v1094 = vpop.permute.xlu0 %1093
    %v1096 = vmul.f32 %v1089, %v1094
    %1098 = vrot.lane.b32.xlu0 %v1096, 32
    %v1099 = vpop.permute.xlu0 %1098
    %v1101 = vadd.f32 %v1091, %v1099
    %v1102 = vtanh.pop %v1101
    %1104 = vrot.lane.b32.xlu0 %v1102, 64
    %v1105 = vpop.permute.xlu0 %1104
    %v1107 = vmul.f32 %v1089, %v1105
    %v1110 = vunpack.c.l.s4 1983009808
    %v1111 = vunpack.c.0.s8 %v1110
    %v1112 = vlaneseq
    %v1113 = vshrl.u32 %v1112, 7
    %v1114 = vsub.s32 %v1111, %v1113
    %v1115 = vrot.slane %v1107, %v1114
    %1116 = vrot.lane.b32.xlu0 %v1115, 32
    %v1117 = vpop.permute.xlu0 %1116
    %v1118 = vsel %vm277, %v1117, 0
    %1120 = vmatprep.subr.mxu0 %v230
    %1121 = vmatpush1.msra.mxu0 %v229
    %1122 = vmatprep.subr.mxu0 %v232
    %1123 = vmatpush1.msra.mxu0 %v231
    %1124 = vmatprep.subr.mxu0 %v234
    %1125 = vmatpush1.msra.mxu0 %v233
    %1126 = vmatprep.subr.mxu0 %v236
    %1127 = vmatpush1.msra.mxu0 %v235
    %1128 = vmatprep.subr.mxu0 0.0
    %1129 = vmatpush1.msra.mxu0 0.0
    %1130 = vmatprep.subr.mxu0 0.0
    %1131 = vmatpush1.msra.mxu0 0.0
    %1132 = vmatprep.subr.mxu0 0.0
    %1133 = vmatpush1.msra.mxu0 0.0
    %1134 = vmatprep.subr.mxu0 0.0
    %1135 = vmatpush1.msra.mxu0 0.0
    %1136 = vmatprep.subr.mxu0 0.0
    %1137 = vmatpush1.msra.mxu0 0.0
    %1138 = vmatprep.subr.mxu0 0.0
    %1139 = vmatpush1.msra.mxu0 0.0
    %1140 = vmatprep.subr.mxu0 0.0
    %1141 = vmatpush1.msra.mxu0 0.0
    %1142 = vmatprep.subr.mxu0 0.0
    %1143 = vmatpush1.msra.mxu0 0.0
    %1144 = vmatprep.subr.mxu0 0.0
    %1145 = vmatpush1.msra.mxu0 0.0
    %1146 = vmatprep.subr.mxu0 0.0
    %1147 = vmatpush1.msra.mxu0 0.0
    %1148 = vmatprep.subr.mxu0 0.0
    %1149 = vmatpush1.msra.mxu0 0.0
    %1150 = vmatprep.subr.mxu0 0.0
    %1151 = vmatpush1.msra.mxu0 0.0
    %1152 = vmatprep.subr.mxu0 0.0
    %1153 = vmatpush1.msra.mxu0 0.0
    %1154 = vmatprep.subr.mxu0 0.0
    %1155 = vmatpush1.msra.mxu0 0.0
    %1156 = vmatprep.subr.mxu0 0.0
    %1157 = vmatpush1.msra.mxu0 0.0
    %1158 = vmatprep.subr.mxu0 0.0
    %1159 = vmatpush1.msra.mxu0 0.0
    %1160 = vmatprep.subr.mxu0 0.0
    %1161 = vmatpush1.msra.mxu0 0.0
    %1162 = vmatprep.subr.mxu0 0.0
    %1163 = vmatpush1.msra.mxu0 0.0
    %1164 = vmatprep.subr.mxu0 0.0
    %1165 = vmatpush1.msra.mxu0 0.0
    %1166 = vmatprep.subr.mxu0 0.0
    %1167 = vmatpush1.msra.mxu0 0.0
    %1168 = vmatprep.subr.mxu0 0.0
    %1169 = vmatpush1.msra.mxu0 0.0
    %1170 = vmatprep.subr.mxu0 0.0
    %1171 = vmatpush1.msra.mxu0 0.0
    %1172 = vmatprep.subr.mxu0 0.0
    %1173 = vmatpush1.msra.mxu0 0.0
    %1174 = vmatprep.subr.mxu0 0.0
    %1175 = vmatpush1.msra.mxu0 0.0
    %1176 = vmatprep.subr.mxu0 0.0
    %1177 = vmatpush1.msra.mxu0 0.0
    %1178 = vmatprep.subr.mxu0 0.0
    %1179 = vmatpush1.msra.mxu0 0.0
    %1180 = vmatprep.subr.mxu0 0.0
    %1181 = vmatpush1.msra.mxu0 0.0
    %1182 = vmatprep.subr.mxu0 0.0
    %1183 = vmatpush1.msra.mxu0 0.0
    %1184 = vmatprep.mubr.f32.mxu0 0.0
    %1185 = vmatmul.mubr.f32.gmra.mrb[0].mxu0 %v1118
    %v1186 = vpop.f32.mrb[0].mxu0
    %v1187 = vadd.f32 0.0, %v1186
    %v1188 = vpop.f32.mrb[0].mxu0
    %v1189 = vadd.f32 0.0, %v1188
    %1190 = vdwg.mxu0
    %1192 = vrot.lane.b32.xlu0 %v1082, 32
    %v1193 = vpop.permute.xlu0 %1192
    %v1194 = vsel %vm277, %v1193, 0
    %1196 = vmatprep.subr.mxu0 0.0
    %1197 = vmatpush1.msra.mxu0 %v237
    %1198 = vmatprep.subr.mxu0 0.0
    %1199 = vmatpush1.msra.mxu0 %v238
    %1200 = vmatprep.subr.mxu0 0.0
    %1201 = vmatpush1.msra.mxu0 %v239
    %1202 = vmatprep.subr.mxu0 0.0
    %1203 = vmatpush1.msra.mxu0 %v240
    %1204 = vmatprep.subr.mxu0 0.0
    %1205 = vmatpush1.msra.mxu0 0.0
    %1206 = vmatprep.subr.mxu0 0.0
    %1207 = vmatpush1.msra.mxu0 0.0
    %1208 = vmatprep.subr.mxu0 0.0
    %1209 = vmatpush1.msra.mxu0 0.0
    %1210 = vmatprep.subr.mxu0 0.0
    %1211 = vmatpush1.msra.mxu0 0.0
    %1212 = vmatprep.subr.mxu0 0.0
    %1213 = vmatpush1.msra.mxu0 0.0
    %1214 = vmatprep.subr.mxu0 0.0
    %1215 = vmatpush1.msra.mxu0 0.0
    %1216 = vmatprep.subr.mxu0 0.0
    %1217 = vmatpush1.msra.mxu0 0.0
    %1218 = vmatprep.subr.mxu0 0.0
    %1219 = vmatpush1.msra.mxu0 0.0
    %1220 = vmatprep.subr.mxu0 0.0
    %1221 = vmatpush1.msra.mxu0 0.0
    %1222 = vmatprep.subr.mxu0 0.0
    %1223 = vmatpush1.msra.mxu0 0.0
    %1224 = vmatprep.subr.mxu0 0.0
    %1225 = vmatpush1.msra.mxu0 0.0
    %1226 = vmatprep.subr.mxu0 0.0
    %1227 = vmatpush1.msra.mxu0 0.0
    %1228 = vmatprep.subr.mxu0 0.0
    %1229 = vmatpush1.msra.mxu0 0.0
    %1230 = vmatprep.subr.mxu0 0.0
    %1231 = vmatpush1.msra.mxu0 0.0
    %1232 = vmatprep.subr.mxu0 0.0
    %1233 = vmatpush1.msra.mxu0 0.0
    %1234 = vmatprep.subr.mxu0 0.0
    %1235 = vmatpush1.msra.mxu0 0.0
    %1236 = vmatprep.subr.mxu0 0.0
    %1237 = vmatpush1.msra.mxu0 0.0
    %1238 = vmatprep.subr.mxu0 0.0
    %1239 = vmatpush1.msra.mxu0 0.0
    %1240 = vmatprep.subr.mxu0 0.0
    %1241 = vmatpush1.msra.mxu0 0.0
    %1242 = vmatprep.subr.mxu0 0.0
    %1243 = vmatpush1.msra.mxu0 0.0
    %1244 = vmatprep.subr.mxu0 0.0
    %1245 = vmatpush1.msra.mxu0 0.0
    %1246 = vmatprep.subr.mxu0 0.0
    %1247 = vmatpush1.msra.mxu0 0.0
    %1248 = vmatprep.subr.mxu0 0.0
    %1249 = vmatpush1.msra.mxu0 0.0
    %1250 = vmatprep.subr.mxu0 0.0
    %1251 = vmatpush1.msra.mxu0 0.0
    %1252 = vmatprep.subr.mxu0 0.0
    %1253 = vmatpush1.msra.mxu0 0.0
    %1254 = vmatprep.subr.mxu0 0.0
    %1255 = vmatpush1.msra.mxu0 0.0
    %1256 = vmatprep.subr.mxu0 0.0
    %1257 = vmatpush1.msra.mxu0 0.0
    %1258 = vmatprep.subr.mxu0 0.0
    %1259 = vmatpush1.msra.mxu0 0.0
    %1260 = vmatprep.mubr.f32.mxu0 0.0
    %1261 = vmatmul.mubr.f32.gmra.mrb[0].mxu0 %v1194
    %v1262 = vpop.f32.mrb[0].mxu0
    %v1263 = vadd.f32 0.0, %v1262
    %v1264 = vpop.f32.mrb[0].mxu0
    %1265 = vdwg.mxu0
    %v1266 = vadd.f32 %v1189, %v1263
    %v1267 = vadd.f32 %v1266, %v429
    %v1268 = vxor.u32 %v1267, 2147483648
    %v1269 = vmul.f32 %v1268, 1.442695
    %v1270 = vpow.pop %v1269
    %v1271 = vadd.f32 %v1270, 1.0
    %v1272 = vrcp.pop %v1271
    %v1273 = vmul.f32 1.0, %v1272
    %v1274 = vtanh.pop %v1267
    %v1275 = vmul.f32 %v1273, %v1076
    %1277 = vrot.lane.b32.xlu0 %v1274, 64
    %v1278 = vpop.permute.xlu0 %1277
    %v1280 = vmul.f32 %v1273, %v1278
    %1282 = vrot.lane.b32.xlu0 %v1280, 32
    %v1283 = vpop.permute.xlu0 %1282
    %v1285 = vadd.f32 %v1275, %v1283
    %v1286 = vtanh.pop %v1285
    %1288 = vrot.lane.b32.xlu0 %v1286, 64
    %v1289 = vpop.permute.xlu0 %1288
    %v1291 = vmul.f32 %v1273, %v1289
    %v1292 = vadd.f32 %v219, %v1187
    %v1293 = vxor.u32 %v1292, 2147483648
    %v1294 = vmul.f32 %v1293, 1.442695
    %v1295 = vpow.pop %v1294
    %v1296 = vadd.f32 %v1295, 1.0
    %v1297 = vrcp.pop %v1296
    %v1298 = vmul.f32 1.0, %v1297
    %v1299 = vtanh.pop %v1292
    %v1300 = vmul.f32 %v1298, %v1101
    %1302 = vrot.lane.b32.xlu0 %v1299, 64
    %v1303 = vpop.permute.xlu0 %1302
    %v1305 = vmul.f32 %v1298, %v1303
    %1307 = vrot.lane.b32.xlu0 %v1305, 32
    %v1308 = vpop.permute.xlu0 %1307
    %v1310 = vadd.f32 %v1300, %v1308
    %v1311 = vtanh.pop %v1310
    %1313 = vrot.lane.b32.xlu0 %v1311, 64
    %v1314 = vpop.permute.xlu0 %1313
    %v1316 = vmul.f32 %v1298, %v1314
    %v1319 = vunpack.c.l.s4 1983009808
    %v1320 = vunpack.c.0.s8 %v1319
    %v1321 = vlaneseq
    %v1322 = vshrl.u32 %v1321, 7
    %v1323 = vsub.s32 %v1320, %v1322
    %v1324 = vrot.slane %v1316, %v1323
    %1325 = vrot.lane.b32.xlu0 %v1324, 32
    %v1326 = vpop.permute.xlu0 %1325
    %v1327 = vsel %vm277, %v1326, 0
    %1329 = vmatprep.subr.mxu0 %v230
    %1330 = vmatpush1.msra.mxu0 %v229
    %1331 = vmatprep.subr.mxu0 %v232
    %1332 = vmatpush1.msra.mxu0 %v231
    %1333 = vmatprep.subr.mxu0 %v234
    %1334 = vmatpush1.msra.mxu0 %v233
    %1335 = vmatprep.subr.mxu0 %v236
    %1336 = vmatpush1.msra.mxu0 %v235
    %1337 = vmatprep.subr.mxu0 0.0
    %1338 = vmatpush1.msra.mxu0 0.0
    %1339 = vmatprep.subr.mxu0 0.0
    %1340 = vmatpush1.msra.mxu0 0.0
    %1341 = vmatprep.subr.mxu0 0.0
    %1342 = vmatpush1.msra.mxu0 0.0
    %1343 = vmatprep.subr.mxu0 0.0
    %1344 = vmatpush1.msra.mxu0 0.0
    %1345 = vmatprep.subr.mxu0 0.0
    %1346 = vmatpush1.msra.mxu0 0.0
    %1347 = vmatprep.subr.mxu0 0.0
    %1348 = vmatpush1.msra.mxu0 0.0
    %1349 = vmatprep.subr.mxu0 0.0
    %1350 = vmatpush1.msra.mxu0 0.0
    %1351 = vmatprep.subr.mxu0 0.0
    %1352 = vmatpush1.msra.mxu0 0.0
    %1353 = vmatprep.subr.mxu0 0.0
    %1354 = vmatpush1.msra.mxu0 0.0
    %1355 = vmatprep.subr.mxu0 0.0
    %1356 = vmatpush1.msra.mxu0 0.0
    %1357 = vmatprep.subr.mxu0 0.0
    %1358 = vmatpush1.msra.mxu0 0.0
    %1359 = vmatprep.subr.mxu0 0.0
    %1360 = vmatpush1.msra.mxu0 0.0
    %1361 = vmatprep.subr.mxu0 0.0
    %1362 = vmatpush1.msra.mxu0 0.0
    %1363 = vmatprep.subr.mxu0 0.0
    %1364 = vmatpush1.msra.mxu0 0.0
    %1365 = vmatprep.subr.mxu0 0.0
    %1366 = vmatpush1.msra.mxu0 0.0
    %1367 = vmatprep.subr.mxu0 0.0
    %1368 = vmatpush1.msra.mxu0 0.0
    %1369 = vmatprep.subr.mxu0 0.0
    %1370 = vmatpush1.msra.mxu0 0.0
    %1371 = vmatprep.subr.mxu0 0.0
    %1372 = vmatpush1.msra.mxu0 0.0
    %1373 = vmatprep.subr.mxu0 0.0
    %1374 = vmatpush1.msra.mxu0 0.0
    %1375 = vmatprep.subr.mxu0 0.0
    %1376 = vmatpush1.msra.mxu0 0.0
    %1377 = vmatprep.subr.mxu0 0.0
    %1378 = vmatpush1.msra.mxu0 0.0
    %1379 = vmatprep.subr.mxu0 0.0
    %1380 = vmatpush1.msra.mxu0 0.0
    %1381 = vmatprep.subr.mxu0 0.0
    %1382 = vmatpush1.msra.mxu0 0.0
    %1383 = vmatprep.subr.mxu0 0.0
    %1384 = vmatpush1.msra.mxu0 0.0
    %1385 = vmatprep.subr.mxu0 0.0
    %1386 = vmatpush1.msra.mxu0 0.0
    %1387 = vmatprep.subr.mxu0 0.0
    %1388 = vmatpush1.msra.mxu0 0.0
    %1389 = vmatprep.subr.mxu0 0.0
    %1390 = vmatpush1.msra.mxu0 0.0
    %1391 = vmatprep.subr.mxu0 0.0
    %1392 = vmatpush1.msra.mxu0 0.0
    %1393 = vmatprep.mubr.f32.mxu0 0.0
    %1394 = vmatmul.mubr.f32.gmra.mrb[0].mxu0 %v1327
    %v1395 = vpop.f32.mrb[0].mxu0
    %v1396 = vadd.f32 0.0, %v1395
    %v1397 = vpop.f32.mrb[0].mxu0
    %v1398 = vadd.f32 0.0, %v1397
    %1399 = vdwg.mxu0
    %1401 = vrot.lane.b32.xlu0 %v1291, 32
    %v1402 = vpop.permute.xlu0 %1401
    %v1403 = vsel %vm277, %v1402, 0
    %1405 = vmatprep.subr.mxu0 0.0
    %1406 = vmatpush1.msra.mxu0 %v237
    %1407 = vmatprep.subr.mxu0 0.0
    %1408 = vmatpush1.msra.mxu0 %v238
    %1409 = vmatprep.subr.mxu0 0.0
    %1410 = vmatpush1.msra.mxu0 %v239
    %1411 = vmatprep.subr.mxu0 0.0
    %1412 = vmatpush1.msra.mxu0 %v240
    %1413 = vmatprep.subr.mxu0 0.0
    %1414 = vmatpush1.msra.mxu0 0.0
    %1415 = vmatprep.subr.mxu0 0.0
    %1416 = vmatpush1.msra.mxu0 0.0
    %1417 = vmatprep.subr.mxu0 0.0
    %1418 = vmatpush1.msra.mxu0 0.0
    %1419 = vmatprep.subr.mxu0 0.0
    %1420 = vmatpush1.msra.mxu0 0.0
    %1421 = vmatprep.subr.mxu0 0.0
    %1422 = vmatpush1.msra.mxu0 0.0
    %1423 = vmatprep.subr.mxu0 0.0
    %1424 = vmatpush1.msra.mxu0 0.0
    %1425 = vmatprep.subr.mxu0 0.0
    %1426 = vmatpush1.msra.mxu0 0.0
    %1427 = vmatprep.subr.mxu0 0.0
    %1428 = vmatpush1.msra.mxu0 0.0
    %1429 = vmatprep.subr.mxu0 0.0
    %1430 = vmatpush1.msra.mxu0 0.0
    %1431 = vmatprep.subr.mxu0 0.0
    %1432 = vmatpush1.msra.mxu0 0.0
    %1433 = vmatprep.subr.mxu0 0.0
    %1434 = vmatpush1.msra.mxu0 0.0
    %1435 = vmatprep.subr.mxu0 0.0
    %1436 = vmatpush1.msra.mxu0 0.0
    %1437 = vmatprep.subr.mxu0 0.0
    %1438 = vmatpush1.msra.mxu0 0.0
    %1439 = vmatprep.subr.mxu0 0.0
    %1440 = vmatpush1.msra.mxu0 0.0
    %1441 = vmatprep.subr.mxu0 0.0
    %1442 = vmatpush1.msra.mxu0 0.0
    %1443 = vmatprep.subr.mxu0 0.0
    %1444 = vmatpush1.msra.mxu0 0.0
    %1445 = vmatprep.subr.mxu0 0.0
    %1446 = vmatpush1.msra.mxu0 0.0
    %1447 = vmatprep.subr.mxu0 0.0
    %1448 = vmatpush1.msra.mxu0 0.0
    %1449 = vmatprep.subr.mxu0 0.0
    %1450 = vmatpush1.msra.mxu0 0.0
    %1451 = vmatprep.subr.mxu0 0.0
    %1452 = vmatpush1.msra.mxu0 0.0
    %1453 = vmatprep.subr.mxu0 0.0
    %1454 = vmatpush1.msra.mxu0 0.0
    %1455 = vmatprep.subr.mxu0 0.0
    %1456 = vmatpush1.msra.mxu0 0.0
    %1457 = vmatprep.subr.mxu0 0.0
    %1458 = vmatpush1.msra.mxu0 0.0
    %1459 = vmatprep.subr.mxu0 0.0
    %1460 = vmatpush1.msra.mxu0 0.0
    %1461 = vmatprep.subr.mxu0 0.0
    %1462 = vmatpush1.msra.mxu0 0.0
    %1463 = vmatprep.subr.mxu0 0.0
    %1464 = vmatpush1.msra.mxu0 0.0
    %1465 = vmatprep.subr.mxu0 0.0
    %1466 = vmatpush1.msra.mxu0 0.0
    %1467 = vmatprep.subr.mxu0 0.0
    %1468 = vmatpush1.msra.mxu0 0.0
    %1469 = vmatprep.mubr.f32.mxu0 0.0
    %1470 = vmatmul.mubr.f32.gmra.mrb[0].mxu0 %v1403
    %v1471 = vpop.f32.mrb[0].mxu0
    %v1472 = vadd.f32 0.0, %v1471
    %v1473 = vpop.f32.mrb[0].mxu0
    %1474 = vdwg.mxu0
    %v1475 = vadd.f32 %v1398, %v1472
    %v1476 = vadd.f32 %v1475, %v429
    %v1477 = vxor.u32 %v1476, 2147483648
    %v1478 = vmul.f32 %v1477, 1.442695
    %v1479 = vpow.pop %v1478
    %v1480 = vadd.f32 %v1479, 1.0
    %v1481 = vrcp.pop %v1480
    %v1482 = vmul.f32 1.0, %v1481
    %v1483 = vtanh.pop %v1476
    %v1484 = vmul.f32 %v1482, %v1285
    %1486 = vrot.lane.b32.xlu0 %v1483, 64
    %v1487 = vpop.permute.xlu0 %1486
    %v1489 = vmul.f32 %v1482, %v1487
    %1491 = vrot.lane.b32.xlu0 %v1489, 32
    %v1492 = vpop.permute.xlu0 %1491
    %v1494 = vadd.f32 %v1484, %v1492
    %v1495 = vtanh.pop %v1494
    %1497 = vrot.lane.b32.xlu0 %v1495, 64
    %v1498 = vpop.permute.xlu0 %1497
    %v1500 = vmul.f32 %v1482, %v1498
    %v1501 = vadd.f32 %v218, %v1396
    %v1502 = vxor.u32 %v1501, 2147483648
    %v1503 = vmul.f32 %v1502, 1.442695
    %v1504 = vpow.pop %v1503
    %v1505 = vadd.f32 %v1504, 1.0
    %v1506 = vrcp.pop %v1505
    %v1507 = vmul.f32 1.0, %v1506
    %v1508 = vtanh.pop %v1501
    %v1509 = vmul.f32 %v1507, %v1310
    %1511 = vrot.lane.b32.xlu0 %v1508, 64
    %v1512 = vpop.permute.xlu0 %1511
    %v1514 = vmul.f32 %v1507, %v1512
    %1516 = vrot.lane.b32.xlu0 %v1514, 32
    %v1517 = vpop.permute.xlu0 %1516
    %v1519 = vadd.f32 %v1509, %v1517
    %v1520 = vtanh.pop %v1519
    %1522 = vrot.lane.b32.xlu0 %v1520, 64
    %v1523 = vpop.permute.xlu0 %1522
    %v1525 = vmul.f32 %v1507, %v1523
    %v1528 = vunpack.c.l.s4 1983009808
    %v1529 = vunpack.c.0.s8 %v1528
    %v1530 = vlaneseq
    %v1531 = vshrl.u32 %v1530, 7
    %v1532 = vsub.s32 %v1529, %v1531
    %v1533 = vrot.slane %v1525, %v1532
    %1534 = vrot.lane.b32.xlu0 %v1533, 32
    %v1535 = vpop.permute.xlu0 %1534
    %v1536 = vsel %vm277, %v1535, 0
    %1538 = vmatprep.subr.mxu0 %v230
    %1539 = vmatpush1.msra.mxu0 %v229
    %1540 = vmatprep.subr.mxu0 %v232
    %1541 = vmatpush1.msra.mxu0 %v231
    %1542 = vmatprep.subr.mxu0 %v234
    %1543 = vmatpush1.msra.mxu0 %v233
    %1544 = vmatprep.subr.mxu0 %v236
    %1545 = vmatpush1.msra.mxu0 %v235
    %1546 = vmatprep.subr.mxu0 0.0
    %1547 = vmatpush1.msra.mxu0 0.0
    %1548 = vmatprep.subr.mxu0 0.0
    %1549 = vmatpush1.msra.mxu0 0.0
    %1550 = vmatprep.subr.mxu0 0.0
    %1551 = vmatpush1.msra.mxu0 0.0
    %1552 = vmatprep.subr.mxu0 0.0
    %1553 = vmatpush1.msra.mxu0 0.0
    %1554 = vmatprep.subr.mxu0 0.0
    %1555 = vmatpush1.msra.mxu0 0.0
    %1556 = vmatprep.subr.mxu0 0.0
    %1557 = vmatpush1.msra.mxu0 0.0
    %1558 = vmatprep.subr.mxu0 0.0
    %1559 = vmatpush1.msra.mxu0 0.0
    %1560 = vmatprep.subr.mxu0 0.0
    %1561 = vmatpush1.msra.mxu0 0.0
    %1562 = vmatprep.subr.mxu0 0.0
    %1563 = vmatpush1.msra.mxu0 0.0
    %1564 = vmatprep.subr.mxu0 0.0
    %1565 = vmatpush1.msra.mxu0 0.0
    %1566 = vmatprep.subr.mxu0 0.0
    %1567 = vmatpush1.msra.mxu0 0.0
    %1568 = vmatprep.subr.mxu0 0.0
    %1569 = vmatpush1.msra.mxu0 0.0
    %1570 = vmatprep.subr.mxu0 0.0
    %1571 = vmatpush1.msra.mxu0 0.0
    %1572 = vmatprep.subr.mxu0 0.0
    %1573 = vmatpush1.msra.mxu0 0.0
    %1574 = vmatprep.subr.mxu0 0.0
    %1575 = vmatpush1.msra.mxu0 0.0
    %1576 = vmatprep.subr.mxu0 0.0
    %1577 = vmatpush1.msra.mxu0 0.0
    %1578 = vmatprep.subr.mxu0 0.0
    %1579 = vmatpush1.msra.mxu0 0.0
    %1580 = vmatprep.subr.mxu0 0.0
    %1581 = vmatpush1.msra.mxu0 0.0
    %1582 = vmatprep.subr.mxu0 0.0
    %1583 = vmatpush1.msra.mxu0 0.0
    %1584 = vmatprep.subr.mxu0 0.0
    %1585 = vmatpush1.msra.mxu0 0.0
    %1586 = vmatprep.subr.mxu0 0.0
    %1587 = vmatpush1.msra.mxu0 0.0
    %1588 = vmatprep.subr.mxu0 0.0
    %1589 = vmatpush1.msra.mxu0 0.0
    %1590 = vmatprep.subr.mxu0 0.0
    %1591 = vmatpush1.msra.mxu0 0.0
    %1592 = vmatprep.subr.mxu0 0.0
    %1593 = vmatpush1.msra.mxu0 0.0
    %1594 = vmatprep.subr.mxu0 0.0
    %1595 = vmatpush1.msra.mxu0 0.0
    %1596 = vmatprep.subr.mxu0 0.0
    %1597 = vmatpush1.msra.mxu0 0.0
    %1598 = vmatprep.subr.mxu0 0.0
    %1599 = vmatpush1.msra.mxu0 0.0
    %1600 = vmatprep.subr.mxu0 0.0
    %1601 = vmatpush1.msra.mxu0 0.0
    %1602 = vmatprep.mubr.f32.mxu0 0.0
    %1603 = vmatmul.mubr.f32.gmra.mrb[0].mxu0 %v1536
    %v1604 = vpop.f32.mrb[0].mxu0
    %v1605 = vadd.f32 0.0, %v1604
    %v1606 = vpop.f32.mrb[0].mxu0
    %v1607 = vadd.f32 0.0, %v1606
    %1608 = vdwg.mxu0
    %1610 = vrot.lane.b32.xlu0 %v1500, 32
    %v1611 = vpop.permute.xlu0 %1610
    %v1612 = vsel %vm277, %v1611, 0
    %1614 = vmatprep.subr.mxu0 0.0
    %1615 = vmatpush1.msra.mxu0 %v237
    %1616 = vmatprep.subr.mxu0 0.0
    %1617 = vmatpush1.msra.mxu0 %v238
    %1618 = vmatprep.subr.mxu0 0.0
    %1619 = vmatpush1.msra.mxu0 %v239
    %1620 = vmatprep.subr.mxu0 0.0
    %1621 = vmatpush1.msra.mxu0 %v240
    %1622 = vmatprep.subr.mxu0 0.0
    %1623 = vmatpush1.msra.mxu0 0.0
    %1624 = vmatprep.subr.mxu0 0.0
    %1625 = vmatpush1.msra.mxu0 0.0
    %1626 = vmatprep.subr.mxu0 0.0
    %1627 = vmatpush1.msra.mxu0 0.0
    %1628 = vmatprep.subr.mxu0 0.0
    %1629 = vmatpush1.msra.mxu0 0.0
    %1630 = vmatprep.subr.mxu0 0.0
    %1631 = vmatpush1.msra.mxu0 0.0
    %1632 = vmatprep.subr.mxu0 0.0
    %1633 = vmatpush1.msra.mxu0 0.0
    %1634 = vmatprep.subr.mxu0 0.0
    %1635 = vmatpush1.msra.mxu0 0.0
    %1636 = vmatprep.subr.mxu0 0.0
    %1637 = vmatpush1.msra.mxu0 0.0
    %1638 = vmatprep.subr.mxu0 0.0
    %1639 = vmatpush1.msra.mxu0 0.0
    %1640 = vmatprep.subr.mxu0 0.0
    %1641 = vmatpush1.msra.mxu0 0.0
    %1642 = vmatprep.subr.mxu0 0.0
    %1643 = vmatpush1.msra.mxu0 0.0
    %1644 = vmatprep.subr.mxu0 0.0
    %1645 = vmatpush1.msra.mxu0 0.0
    %1646 = vmatprep.subr.mxu0 0.0
    %1647 = vmatpush1.msra.mxu0 0.0
    %1648 = vmatprep.subr.mxu0 0.0
    %1649 = vmatpush1.msra.mxu0 0.0
    %1650 = vmatprep.subr.mxu0 0.0
    %1651 = vmatpush1.msra.mxu0 0.0
    %1652 = vmatprep.subr.mxu0 0.0
    %1653 = vmatpush1.msra.mxu0 0.0
    %1654 = vmatprep.subr.mxu0 0.0
    %1655 = vmatpush1.msra.mxu0 0.0
    %1656 = vmatprep.subr.mxu0 0.0
    %1657 = vmatpush1.msra.mxu0 0.0
    %1658 = vmatprep.subr.mxu0 0.0
    %1659 = vmatpush1.msra.mxu0 0.0
    %1660 = vmatprep.subr.mxu0 0.0
    %1661 = vmatpush1.msra.mxu0 0.0
    %1662 = vmatprep.subr.mxu0 0.0
    %1663 = vmatpush1.msra.mxu0 0.0
    %1664 = vmatprep.subr.mxu0 0.0
    %1665 = vmatpush1.msra.mxu0 0.0
    %1666 = vmatprep.subr.mxu0 0.0
    %1667 = vmatpush1.msra.mxu0 0.0
    %1668 = vmatprep.subr.mxu0 0.0
    %1669 = vmatpush1.msra.mxu0 0.0
    %1670 = vmatprep.subr.mxu0 0.0
    %1671 = vmatpush1.msra.mxu0 0.0
    %1672 = vmatprep.subr.mxu0 0.0
    %1673 = vmatpush1.msra.mxu0 0.0
    %1674 = vmatprep.subr.mxu0 0.0
    %1675 = vmatpush1.msra.mxu0 0.0
    %1676 = vmatprep.subr.mxu0 0.0
    %1677 = vmatpush1.msra.mxu0 0.0
    %1678 = vmatprep.mubr.f32.mxu0 0.0
    %1679 = vmatmul.mubr.f32.gmra.mrb[0].mxu0 %v1612
    %v1680 = vpop.f32.mrb[0].mxu0
    %v1681 = vadd.f32 0.0, %v1680
    %v1682 = vpop.f32.mrb[0].mxu0
    %1683 = vdwg.mxu0
    %v1684 = vadd.f32 %v1607, %v1681
    %v1685 = vadd.f32 %v1684, %v429
    %v1686 = vxor.u32 %v1685, 2147483648
    %v1687 = vmul.f32 %v1686, 1.442695
    %v1688 = vpow.pop %v1687
    %v1689 = vadd.f32 %v1688, 1.0
    %v1690 = vrcp.pop %v1689
    %v1691 = vmul.f32 1.0, %v1690
    %v1692 = vtanh.pop %v1685
    %v1693 = vmul.f32 %v1691, %v1494
    %1695 = vrot.lane.b32.xlu0 %v1692, 64
    %v1696 = vpop.permute.xlu0 %1695
    %v1698 = vmul.f32 %v1691, %v1696
    %1700 = vrot.lane.b32.xlu0 %v1698, 32
    %v1701 = vpop.permute.xlu0 %1700
    %v1703 = vadd.f32 %v1693, %v1701
    %v1704 = vtanh.pop %v1703
    %1706 = vrot.lane.b32.xlu0 %v1704, 64
    %v1707 = vpop.permute.xlu0 %1706
    %v1709 = vmul.f32 %v1691, %v1707
    %v1710 = vadd.f32 %v220, %v1605
    %v1711 = vxor.u32 %v1710, 2147483648
    %v1712 = vmul.f32 %v1711, 1.442695
    %v1713 = vpow.pop %v1712
    %v1714 = vadd.f32 %v1713, 1.0
    %v1715 = vrcp.pop %v1714
    %v1716 = vmul.f32 1.0, %v1715
    %v1717 = vtanh.pop %v1710
    %v1718 = vmul.f32 %v1716, %v1519
    %1720 = vrot.lane.b32.xlu0 %v1717, 64
    %v1721 = vpop.permute.xlu0 %1720
    %v1723 = vmul.f32 %v1716, %v1721
    %1725 = vrot.lane.b32.xlu0 %v1723, 32
    %v1726 = vpop.permute.xlu0 %1725
    %v1728 = vadd.f32 %v1718, %v1726
    %v1729 = vtanh.pop %v1728
    %1731 = vrot.lane.b32.xlu0 %v1729, 64
    %v1732 = vpop.permute.xlu0 %1731
    %v1734 = vmul.f32 %v1716, %v1732
    %v1737 = vunpack.c.l.s4 1983009808
    %v1738 = vunpack.c.0.s8 %v1737
    %v1739 = vlaneseq
    %v1740 = vshrl.u32 %v1739, 7
    %v1741 = vsub.s32 %v1738, %v1740
    %v1742 = vrot.slane %v1734, %v1741
    %1743 = vrot.lane.b32.xlu0 %v1742, 32
    %v1744 = vpop.permute.xlu0 %1743
    %v1745 = vsel %vm277, %v1744, 0
    %1747 = vmatprep.subr.mxu0 %v230
    %1748 = vmatpush1.msra.mxu0 %v229
    %1749 = vmatprep.subr.mxu0 %v232
    %1750 = vmatpush1.msra.mxu0 %v231
    %1751 = vmatprep.subr.mxu0 %v234
    %1752 = vmatpush1.msra.mxu0 %v233
    %1753 = vmatprep.subr.mxu0 %v236
    %1754 = vmatpush1.msra.mxu0 %v235
    %1755 = vmatprep.subr.mxu0 0.0
    %1756 = vmatpush1.msra.mxu0 0.0
    %1757 = vmatprep.subr.mxu0 0.0
    %1758 = vmatpush1.msra.mxu0 0.0
    %1759 = vmatprep.subr.mxu0 0.0
    %1760 = vmatpush1.msra.mxu0 0.0
    %1761 = vmatprep.subr.mxu0 0.0
    %1762 = vmatpush1.msra.mxu0 0.0
    %1763 = vmatprep.subr.mxu0 0.0
    %1764 = vmatpush1.msra.mxu0 0.0
    %1765 = vmatprep.subr.mxu0 0.0
    %1766 = vmatpush1.msra.mxu0 0.0
    %1767 = vmatprep.subr.mxu0 0.0
    %1768 = vmatpush1.msra.mxu0 0.0
    %1769 = vmatprep.subr.mxu0 0.0
    %1770 = vmatpush1.msra.mxu0 0.0
    %1771 = vmatprep.subr.mxu0 0.0
    %1772 = vmatpush1.msra.mxu0 0.0
    %1773 = vmatprep.subr.mxu0 0.0
    %1774 = vmatpush1.msra.mxu0 0.0
    %1775 = vmatprep.subr.mxu0 0.0
    %1776 = vmatpush1.msra.mxu0 0.0
    %1777 = vmatprep.subr.mxu0 0.0
    %1778 = vmatpush1.msra.mxu0 0.0
    %1779 = vmatprep.subr.mxu0 0.0
    %1780 = vmatpush1.msra.mxu0 0.0
    %1781 = vmatprep.subr.mxu0 0.0
    %1782 = vmatpush1.msra.mxu0 0.0
    %1783 = vmatprep.subr.mxu0 0.0
    %1784 = vmatpush1.msra.mxu0 0.0
    %1785 = vmatprep.subr.mxu0 0.0
    %1786 = vmatpush1.msra.mxu0 0.0
    %1787 = vmatprep.subr.mxu0 0.0
    %1788 = vmatpush1.msra.mxu0 0.0
    %1789 = vmatprep.subr.mxu0 0.0
    %1790 = vmatpush1.msra.mxu0 0.0
    %1791 = vmatprep.subr.mxu0 0.0
    %1792 = vmatpush1.msra.mxu0 0.0
    %1793 = vmatprep.subr.mxu0 0.0
    %1794 = vmatpush1.msra.mxu0 0.0
    %1795 = vmatprep.subr.mxu0 0.0
    %1796 = vmatpush1.msra.mxu0 0.0
    %1797 = vmatprep.subr.mxu0 0.0
    %1798 = vmatpush1.msra.mxu0 0.0
    %1799 = vmatprep.subr.mxu0 0.0
    %1800 = vmatpush1.msra.mxu0 0.0
    %1801 = vmatprep.subr.mxu0 0.0
    %1802 = vmatpush1.msra.mxu0 0.0
    %1803 = vmatprep.subr.mxu0 0.0
    %1804 = vmatpush1.msra.mxu0 0.0
    %1805 = vmatprep.subr.mxu0 0.0
    %1806 = vmatpush1.msra.mxu0 0.0
    %1807 = vmatprep.subr.mxu0 0.0
    %1808 = vmatpush1.msra.mxu0 0.0
    %1809 = vmatprep.subr.mxu0 0.0
    %1810 = vmatpush1.msra.mxu0 0.0
    %1811 = vmatprep.mubr.f32.mxu0 0.0
    %1812 = vmatmul.mubr.f32.gmra.mrb[0].mxu0 %v1745
    %v1813 = vpop.f32.mrb[0].mxu0
    %v1814 = vpop.f32.mrb[0].mxu0
    %v1815 = vadd.f32 0.0, %v1814
    %1816 = vdwg.mxu0
    %1818 = vrot.lane.b32.xlu0 %v1709, 32
    %v1819 = vpop.permute.xlu0 %1818
    %v1820 = vsel %vm277, %v1819, 0
    %1822 = vmatprep.subr.mxu0 0.0
    %1823 = vmatpush1.msra.mxu0 %v237
    %1824 = vmatprep.subr.mxu0 0.0
    %1825 = vmatpush1.msra.mxu0 %v238
    %1826 = vmatprep.subr.mxu0 0.0
    %1827 = vmatpush1.msra.mxu0 %v239
    %1828 = vmatprep.subr.mxu0 0.0
    %1829 = vmatpush1.msra.mxu0 %v240
    %1830 = vmatprep.subr.mxu0 0.0
    %1831 = vmatpush1.msra.mxu0 0.0
    %1832 = vmatprep.subr.mxu0 0.0
    %1833 = vmatpush1.msra.mxu0 0.0
    %1834 = vmatprep.subr.mxu0 0.0
    %1835 = vmatpush1.msra.mxu0 0.0
    %1836 = vmatprep.subr.mxu0 0.0
    %1837 = vmatpush1.msra.mxu0 0.0
    %1838 = vmatprep.subr.mxu0 0.0
    %1839 = vmatpush1.msra.mxu0 0.0
    %1840 = vmatprep.subr.mxu0 0.0
    %1841 = vmatpush1.msra.mxu0 0.0
    %1842 = vmatprep.subr.mxu0 0.0
    %1843 = vmatpush1.msra.mxu0 0.0
    %1844 = vmatprep.subr.mxu0 0.0
    %1845 = vmatpush1.msra.mxu0 0.0
    %1846 = vmatprep.subr.mxu0 0.0
    %1847 = vmatpush1.msra.mxu0 0.0
    %1848 = vmatprep.subr.mxu0 0.0
    %1849 = vmatpush1.msra.mxu0 0.0
    %1850 = vmatprep.subr.mxu0 0.0
    %1851 = vmatpush1.msra.mxu0 0.0
    %1852 = vmatprep.subr.mxu0 0.0
    %1853 = vmatpush1.msra.mxu0 0.0
    %1854 = vmatprep.subr.mxu0 0.0
    %1855 = vmatpush1.msra.mxu0 0.0
    %1856 = vmatprep.subr.mxu0 0.0
    %1857 = vmatpush1.msra.mxu0 0.0
    %1858 = vmatprep.subr.mxu0 0.0
    %1859 = vmatpush1.msra.mxu0 0.0
    %1860 = vmatprep.subr.mxu0 0.0
    %1861 = vmatpush1.msra.mxu0 0.0
    %1862 = vmatprep.subr.mxu0 0.0
    %1863 = vmatpush1.msra.mxu0 0.0
    %1864 = vmatprep.subr.mxu0 0.0
    %1865 = vmatpush1.msra.mxu0 0.0
    %1866 = vmatprep.subr.mxu0 0.0
    %1867 = vmatpush1.msra.mxu0 0.0
    %1868 = vmatprep.subr.mxu0 0.0
    %1869 = vmatpush1.msra.mxu0 0.0
    %1870 = vmatprep.subr.mxu0 0.0
    %1871 = vmatpush1.msra.mxu0 0.0
    %1872 = vmatprep.subr.mxu0 0.0
    %1873 = vmatpush1.msra.mxu0 0.0
    %1874 = vmatprep.subr.mxu0 0.0
    %1875 = vmatpush1.msra.mxu0 0.0
    %1876 = vmatprep.subr.mxu0 0.0
    %1877 = vmatpush1.msra.mxu0 0.0
    %1878 = vmatprep.subr.mxu0 0.0
    %1879 = vmatpush1.msra.mxu0 0.0
    %1880 = vmatprep.subr.mxu0 0.0
    %1881 = vmatpush1.msra.mxu0 0.0
    %1882 = vmatprep.subr.mxu0 0.0
    %1883 = vmatpush1.msra.mxu0 0.0
    %1884 = vmatprep.subr.mxu0 0.0
    %1885 = vmatpush1.msra.mxu0 0.0
    %1886 = vmatprep.mubr.f32.mxu0 0.0
    %1887 = vmatmul.mubr.f32.gmra.mrb[0].mxu0 %v1820
    %v1888 = vpop.f32.mrb[0].mxu0
    %v1889 = vadd.f32 0.0, %v1888
    %v1890 = vpop.f32.mrb[0].mxu0
    %1891 = vdwg.mxu0
    %v1892 = vadd.f32 %v1815, %v1889
    %v1893 = vadd.f32 %v1892, %v429
    %v1894 = vxor.u32 %v1893, 2147483648
    %v1895 = vmul.f32 %v1894, 1.442695
    %v1896 = vpow.pop %v1895
    %v1897 = vadd.f32 %v1896, 1.0
    %v1898 = vrcp.pop %v1897
    %v1899 = vmul.f32 1.0, %v1898
    %v1900 = vtanh.pop %v1893
    %v1901 = vmul.f32 %v1899, %v1703
    %1903 = vrot.lane.b32.xlu0 %v1900, 64
    %v1904 = vpop.permute.xlu0 %1903
    %v1906 = vmul.f32 %v1899, %v1904
    %1908 = vrot.lane.b32.xlu0 %v1906, 32
    %v1909 = vpop.permute.xlu0 %1908
    %v1911 = vadd.f32 %v1901, %v1909
    %v1912 = vtanh.pop %v1911
    %1914 = vrot.lane.b32.xlu0 %v1912, 64
    %v1915 = vpop.permute.xlu0 %1914
    %v1917 = vmul.f32 %v1899, %v1915
    %v1918 = vld [vmem:[%s6] sm:$0xff]
    %v1919 = vld [vmem:[%s6 + $0x8] sm:$0xff]
    %v1920 = vld [vmem:[%s6 + $0x10] sm:$0xff]
    %v1921 = vld [vmem:[%s6 + $0x18] sm:$0xff]
    %v1922 = vld [vmem:[%s7] sm:$0x1]
    %v1924 = vlaneseq
    %v1925 = vshrl.u32 %v1924, 7
    %v1926 = vsub.s32 0, %v1925
    %v1927 = vrot.slane %v1922, %v1926
    %1930 = vrot.lane.b32.xlu0 %v1917, 32
    %v1931 = vpop.permute.xlu0 %1930
    %v1932 = vsel %vm277, %v1931, 0
    %1934 = vmatprep.subr.mxu0 0.0
    %1935 = vmatpush1.msra.mxu0 %v1918
    %1936 = vmatprep.subr.mxu0 0.0
    %1937 = vmatpush1.msra.mxu0 %v1919
    %1938 = vmatprep.subr.mxu0 0.0
    %1939 = vmatpush1.msra.mxu0 %v1920
    %1940 = vmatprep.subr.mxu0 0.0
    %1941 = vmatpush1.msra.mxu0 %v1921
    %1942 = vmatprep.subr.mxu0 0.0
    %1943 = vmatpush1.msra.mxu0 0.0
    %1944 = vmatprep.subr.mxu0 0.0
    %1945 = vmatpush1.msra.mxu0 0.0
    %1946 = vmatprep.subr.mxu0 0.0
    %1947 = vmatpush1.msra.mxu0 0.0
    %1948 = vmatprep.subr.mxu0 0.0
    %1949 = vmatpush1.msra.mxu0 0.0
    %1950 = vmatprep.subr.mxu0 0.0
    %1951 = vmatpush1.msra.mxu0 0.0
    %1952 = vmatprep.subr.mxu0 0.0
    %1953 = vmatpush1.msra.mxu0 0.0
    %1954 = vmatprep.subr.mxu0 0.0
    %1955 = vmatpush1.msra.mxu0 0.0
    %1956 = vmatprep.subr.mxu0 0.0
    %1957 = vmatpush1.msra.mxu0 0.0
    %1958 = vmatprep.subr.mxu0 0.0
    %1959 = vmatpush1.msra.mxu0 0.0
    %1960 = vmatprep.subr.mxu0 0.0
    %1961 = vmatpush1.msra.mxu0 0.0
    %1962 = vmatprep.subr.mxu0 0.0
    %1963 = vmatpush1.msra.mxu0 0.0
    %1964 = vmatprep.subr.mxu0 0.0
    %1965 = vmatpush1.msra.mxu0 0.0
    %1966 = vmatprep.subr.mxu0 0.0
    %1967 = vmatpush1.msra.mxu0 0.0
    %1968 = vmatprep.subr.mxu0 0.0
    %1969 = vmatpush1.msra.mxu0 0.0
    %1970 = vmatprep.subr.mxu0 0.0
    %1971 = vmatpush1.msra.mxu0 0.0
    %1972 = vmatprep.subr.mxu0 0.0
    %1973 = vmatpush1.msra.mxu0 0.0
    %1974 = vmatprep.subr.mxu0 0.0
    %1975 = vmatpush1.msra.mxu0 0.0
    %1976 = vmatprep.subr.mxu0 0.0
    %1977 = vmatpush1.msra.mxu0 0.0
    %1978 = vmatprep.subr.mxu0 0.0
    %1979 = vmatpush1.msra.mxu0 0.0
    %1980 = vmatprep.subr.mxu0 0.0
    %1981 = vmatpush1.msra.mxu0 0.0
    %1982 = vmatprep.subr.mxu0 0.0
    %1983 = vmatpush1.msra.mxu0 0.0
    %1984 = vmatprep.subr.mxu0 0.0
    %1985 = vmatpush1.msra.mxu0 0.0
    %1986 = vmatprep.subr.mxu0 0.0
    %1987 = vmatpush1.msra.mxu0 0.0
    %1988 = vmatprep.subr.mxu0 0.0
    %1989 = vmatpush1.msra.mxu0 0.0
    %1990 = vmatprep.subr.mxu0 0.0
    %1991 = vmatpush1.msra.mxu0 0.0
    %1992 = vmatprep.subr.mxu0 0.0
    %1993 = vmatpush1.msra.mxu0 0.0
    %1994 = vmatprep.subr.mxu0 0.0
    %1995 = vmatpush1.msra.mxu0 0.0
    %1996 = vmatprep.subr.mxu0 0.0
    %1997 = vmatpush1.msra.mxu0 0.0
    %1998 = vmatprep.mubr.f32.mxu0 0.0
    %1999 = vmatmul.mubr.f32.gmra.mrb[0].mxu0 %v1932
    %v2000 = vpop.f32.mrb[0].mxu0
    %v2001 = vadd.f32 %v1927, %v2000
    %v2002 = vpop.f32.mrb[0].mxu0
    %2003 = vdwg.mxu0
    %v2004 = vmax.f32 %v2001, 0.0
    %vm2005 = vcmp.ne.f32.partialorder %v2001, %v2001
    %v2006 = vadd.f32 %v2001, 0.0
    %v2007 = vand.u32 2147483647, %v2001
    %v2008 = vsub.f32 0.0, %v2007
    %v2009 = vmul.f32 %v2008, 1.442695
    %v2010 = vpow.pop %v2009
    %v2011 = vadd.f32 %v2010, 1.0
    %v2012 = vlog2.pop %v2011
    %v2013 = vmul.f32 %v2012, 0.6931472
    %v2014 = vmul.f32 -0.5, %v2010
    %v2015 = vadd.f32 %v2014, 1.0
    %v2016 = vmul.f32 %v2015, %v2010
    %v2017 = vand.u32 2147483647, %v2010
    %vm2018 = vcmp.lt.f32.partialorder %v2017, 0.0004427343
    %v2019 = vsel %vm2018, %v2016, %v2013
    %v2020 = vadd.f32 %v2004, %v2019
    %v2021 = vsel %vm2005, %v2006, %v2020
    %v2022 = vadd.f32 %v2021, 1e-06
    %v2023 = vlaneseq
    %v2024 = vand.u32 %v2023, 127
    %vm2025 = vcmp.lt.s32.totalorder %v2024, 1
    %v2026 = vsel %vm2025, %v2001, %v2022
    %vm2027 = vcmask 9216
    %2028 = vst.msk [vmem:[%s8] sm:$0x3] %vm2027, %v2026
    // Predicated region
    $region38: #{bayesian_lstm_forward.1} parent=1 // pred_check
      _
    $region39: #{bayesian_lstm_forward.1} parent=1 // pred_check_branch
      %2030 = sbr.rel (0) target = $region41
    $region40: #{bayesian_lstm_forward.1} parent=1 // pred_region
      _
    $region41: #{bayesian_lstm_forward.1} parent=1 // pred_fallthru
      _
    // Predicated region
    $region42: #{bayesian_lstm_forward.1} parent=1 // pred_check
      _
    $region43: #{bayesian_lstm_forward.1} parent=1 // pred_check_branch
      %2032 = sbr.rel (0) target = $region45
    $region44: #{bayesian_lstm_forward.1} parent=1 // pred_region
      _
    $region45: #{bayesian_lstm_forward.1} parent=1 // pred_fallthru
      _
    %2033 = vsyncpa [#allocation3], 1

</llo_original>
